<compile_context>
chip_gen: v7x
topology: tpu7x:2x2x1
jax: 0.10.0
libtpu: 0.0.40
codegen_flags: <defaults>
</compile_context>

<pallas_src>
import jax
import jax.numpy as jnp
from jax import lax
from jax.experimental import pallas as pl
from jax.experimental.pallas import tpu as pltpu  # noqa: F401  (kept for completeness)

# ---------------- model hyper-parameters: FCN(F1, S, D, F2, fs=40, T=56) ------------
F1 = 8          # temporal filters
S = 4           # EEG channels (height of the spatial depthwise conv)
D = 2           # spatial filters per temporal filter
F2 = 16         # pointwise filters
FS = 40         # sampling frequency
T = 56          # time points
N = 2           # batch size

K1 = FS // 2                # 20 : temporal kernel length (conv1 & depthwise conv3)
P1 = FS // 4                # 10 : temporal padding
DF1 = D * F1                # 16
T1 = T + 2 * P1 - K1 + 1    # 57 : width after conv1
T2 = T1 + 2 * P1 - K1 + 1   # 58 : width after separable conv3
NPOOL = T2 // 8             # 7  : width after AvgPool2d((1, 8))
TP_IN = T + 2 * P1          # 76 : pre-padded input width (conv1 padding done in wrapper)
assert NPOOL == T // 8      # final MaxPool2d((1, T//8)) collapses to one column (T=56)


# ----------------------------------- kernel -----------------------------------------
def fcn_kernel(xrep_ref, w1_ref, w2_ref, b2_ref, wdw_ref, wpw_ref, b3_ref,
               w4_ref, pool_ref, b4_ref, out_ref):
    # ---- conv1: temporal conv, bn1 scale folded into the per-row weights -------------
    # xrep: (N*F1*S, TP_IN) value-resident; 20-tap shift-and-accumulate on the VPU.
    x = xrep_ref[...]                                   # (N*F1*S, TP_IN)
    w1 = w1_ref[...]                                    # (N*F1*S, K1)
    acc1 = w1[:, 0:1] * x[:, 0:T1]
    for k in range(1, K1):
        acc1 = acc1 + w1[:, k:k + 1] * x[:, k:k + T1]   # (N*F1*S, T1)

    # ---- conv2 (grouped (S,1) conv) as one block-diagonal MXU matmul ------------------
    # max-norm rescale + bn2 scale already folded into w2; bn1/bn2 shifts folded into b2.
    o2 = jnp.dot(w2_ref[...], acc1, preferred_element_type=jnp.float32)   # (N*DF1, T1)
    o2 = o2 + b2_ref[...]
    # height-1 maxpool: identity; dropout: inference identity.
    # NOTE: expm1 would be marginally more accurate near 0; exp-1 kept (guaranteed lowering).
    o2 = jnp.where(o2 > 0.0, o2, jnp.exp(o2) - 1.0)                        # ELU

    # ---- SeparableConv2d depthwise (1,K1): value-resident zero pad, no VMEM scratch ---
    ndw = wdw_ref.shape[0]                              # N*DF1
    zpad = jnp.zeros((ndw, P1), jnp.float32)
    h3 = jnp.concatenate([zpad, o2, zpad], axis=1)      # (N*DF1, T1 + 2*P1)
    wdw = wdw_ref[...]                                  # (N*DF1, K1)
    acc3 = wdw[:, 0:1] * h3[:, 0:T2]
    for k in range(1, K1):
        acc3 = acc3 + wdw[:, k:k + 1] * h3[:, k:k + T2]  # (N*DF1, T2)

    # ---- pointwise 1x1 conv (bn3 scale folded) as block-diagonal MXU matmul + ELU -----
    h4 = jnp.dot(wpw_ref[...], acc3, preferred_element_type=jnp.float32)   # (N*F2, T2)
    h4 = h4 + b3_ref[...]
    h4 = jnp.where(h4 > 0.0, h4, jnp.exp(h4) - 1.0)     # ELU (dropout: identity)

    # ---- conv4 (1x1, bn4 scale folded) BEFORE AvgPool (both linear, they commute) -----
    s = jnp.dot(w4_ref[...], h4, preferred_element_type=jnp.float32)       # (N, T2)
    # AvgPool2d((1, 8)) via fixed pooling matrix, then MaxPool over the 7 columns.
    pooled = jnp.dot(s, pool_ref[...], preferred_element_type=jnp.float32)  # (N, NPOOL)
    out_ref[...] = jnp.max(pooled, axis=1, keepdims=True) + b4_ref[...]     # (N, 1)


# --------------------------- wrapper: fold params + call kernel ----------------------
def _fold_params(p, n):
    """Fold max-norm rescale + eval-mode BatchNorm into 2-D, lane-friendly weights."""
    # conv1 weight with bn1 scale folded, replicated per (batch, filter, channel) row.
    w1 = p["w1"][:, 0, 0, :] * p["bn1_scale"][:, None]                  # (F1, K1)
    w1rows = jnp.broadcast_to(w1[None, :, None, :], (n, F1, S, K1))
    w1rows = w1rows.reshape(n * F1 * S, K1)

    # conv2: max-norm rescale (norm over output-channel dim, as torch), bn2 scale fold.
    w2 = p["w2"][:, 0, :, 0]                                            # (DF1, S)
    nrm = jnp.sqrt(jnp.sum(w2 * w2, axis=0, keepdims=True))             # (1, S)
    w2m = w2 * (jnp.clip(nrm, 0.0, 1.0) / (1e-8 + nrm))
    w2f = w2m * p["bn2_scale"][:, None]                                 # (DF1, S)
    # bn1 shift propagated through conv2 and folded (with bn2 shift) into the conv2 bias.
    f_of_o = jnp.arange(DF1) // D
    b2 = p["bn2_shift"] + p["bn1_shift"][f_of_o] * jnp.sum(w2f, axis=1)
    # block-diagonal conv2 matrix: over the F1 groups and over the batch.
    eye_f = jnp.eye(F1, dtype=jnp.float32)
    w2blk = (w2f.reshape(F1, D, S)[:, :, None, :] * eye_f[:, None, :, None])
    w2blk = w2blk.reshape(DF1, F1 * S)                                  # (DF1, F1*S)
    eye_n = jnp.eye(n, dtype=jnp.float32)
    w2full = (eye_n[:, None, :, None] * w2blk[None, :, None, :]).reshape(n * DF1, n * F1 * S)
    b2full = jnp.tile(b2, n).reshape(n * DF1, 1)

    # separable conv3: depthwise per-row weights; pointwise block-diag with bn3 folded.
    wdwrows = jnp.tile(p["wdw"][:, 0, 0, :], (n, 1))                    # (n*DF1, K1)
    wpw = p["wpw"][:, :, 0, 0] * p["bn3_scale"][:, None]                # (F2, DF1)
    wpwfull = (eye_n[:, None, :, None] * wpw[None, :, None, :]).reshape(n * F2, n * DF1)
    b3full = jnp.tile(p["bn3_shift"], n).reshape(n * F2, 1)

    # conv4 with bn4 scale folded, block-diag over batch; avg-pool matrix; bn4 shift.
    w4 = p["w4"][0, :, 0, 0] * p["bn4_scale"][0]                        # (F2,)
    w4full = (eye_n[:, :, None] * w4[None, None, :]).reshape(n, n * F2)
    pool = (jnp.arange(T2)[:, None] // 8 == jnp.arange(NPOOL)[None, :]).astype(jnp.float32) / 8.0
    b4 = p["bn4_shift"].reshape(1, 1)
    return w1rows, w2full, b2full, wdwrows, wpwfull, b3full, w4full, pool, b4


@jax.jit
def fcn_forward_pallas(x, p):
    n = x.shape[0]
    folded = _fold_params(p, n)
    # zero-pad time for conv1 and replicate rows over the F1 filters: (n*F1*S, TP_IN)
    xpad = jnp.pad(x.astype(jnp.float32), ((0, 0), (0, 0), (P1, P1)))
    xrep = jnp.broadcast_to(xpad[:, None, :, :], (n, F1, S, TP_IN)).reshape(n * F1 * S, TP_IN)

    # No grid: everything fits in VMEM (<200 KB total); full arrays passed untiled.
    out = pl.pallas_call(
        fcn_kernel,
        out_shape=jax.ShapeDtypeStruct((n, 1), jnp.float32),
    )(xrep, *folded)
    return out                                                          # (n, 1)


# ------------------------------ deterministic params --------------------------------
def init_params(key):
    ks = jax.random.split(key, 9)
    p = {}
    p["w1"] = 0.2 * jax.random.normal(ks[0], (F1, 1, 1, K1), jnp.float32)
    p["w2"] = 0.5 * jax.random.normal(ks[1], (DF1, 1, S, 1), jnp.float32)
    p["wdw"] = 0.2 * jax.random.normal(ks[2], (DF1, 1, 1, K1), jnp.float32)
    p["wpw"] = 0.3 * jax.random.normal(ks[3], (F2, DF1, 1, 1), jnp.float32)
    p["w4"] = 0.3 * jax.random.normal(ks[4], (1, F2, 1, 1), jnp.float32)

    def bn(k, c):   # eval-mode BatchNorm folded into scale/shift (eps = 1e-5)
        kk = jax.random.split(k, 4)
        gamma = 1.0 + 0.1 * jax.random.normal(kk[0], (c,), jnp.float32)
        beta = 0.1 * jax.random.normal(kk[1], (c,), jnp.float32)
        mean = 0.1 * jax.random.normal(kk[2], (c,), jnp.float32)
        var = 0.5 + 0.5 * jnp.abs(jax.random.normal(kk[3], (c,), jnp.float32))
        scale = gamma / jnp.sqrt(var + 1e-5)
        return scale, beta - mean * scale

    p["bn1_scale"], p["bn1_shift"] = bn(ks[5], F1)
    p["bn2_scale"], p["bn2_shift"] = bn(ks[6], DF1)
    p["bn3_scale"], p["bn3_shift"] = bn(ks[7], F2)
    p["bn4_scale"], p["bn4_shift"] = bn(ks[8], 1)
    return p


# --------------------------- pure-JAX reference (for checking) ----------------------
def fcn_forward_ref(x, p):
    dn = ("NCHW", "OIHW", "NCHW")
    hp = lax.Precision.HIGHEST
    bnorm = lambda h, sc, sh: h * sc[None, :, None, None] + sh[None, :, None, None]
    elu = lambda h: jnp.where(h > 0, h, jnp.exp(h) - 1.0)

    h = x.astype(jnp.float32)[:, None, :, :]                       # (N,1,S,T)
    h = lax.conv_general_dilated(h, p["w1"], (1, 1), [(0, 0), (P1, P1)],
                                 dimension_numbers=dn, precision=hp)
    h = bnorm(h, p["bn1_scale"], p["bn1_shift"])
    w2 = p["w2"]
    nrm = jnp.sqrt(jnp.sum(w2 * w2, axis=0, keepdims=True))
    w2s = w2 * (jnp.clip(nrm, 0.0, 1.0) / (1e-8 + nrm))
    h = lax.conv_general_dilated(h, w2s, (1, 1), [(0, 0), (0, 0)],
                                 dimension_numbers=dn, feature_group_count=F1, precision=hp)
    h = bnorm(h, p["bn2_scale"], p["bn2_shift"])
    h = elu(h)                                  # height-1 maxpool identity; dropout eval
    h = lax.conv_general_dilated(h, p["wdw"], (1, 1), [(0, 0), (P1, P1)],
                                 dimension_numbers=dn, feature_group_count=DF1, precision=hp)
    h = lax.conv_general_dilated(h, p["wpw"], (1, 1), [(0, 0), (0, 0)],
                                 dimension_numbers=dn, precision=hp)
    h = bnorm(h, p["bn3_scale"], p["bn3_shift"])
    h = elu(h)
    nw = h.shape[-1] // 8
    h = h[..., : nw * 8].reshape(h.shape[0], h.shape[1], h.shape[2], nw, 8).mean(-1)
    h = lax.conv_general_dilated(h, p["w4"], (1, 1), [(0, 0), (0, 0)],
                                 dimension_numbers=dn, precision=hp)
    h = bnorm(h, p["bn4_scale"], p["bn4_shift"])
    h = jnp.max(h, axis=-1, keepdims=True)
    return h[:, :, 0, 0]                                            # (N, 1)


if __name__ == "__main__":
    key = jax.random.PRNGKey(0)
    kx, kp = jax.random.split(key)
    params = init_params(kp)
    x = jax.random.normal(kx, (N, S, T), jnp.float32)

    out = fcn_forward_pallas(x, params)
    out = jax.block_until_ready(out)
    assert out.shape == (N, 1), out.shape

    ref = fcn_forward_ref(x, params)
    err = float(jnp.max(jnp.abs(out - ref)))
    assert err < 1e-2, f"mismatch vs JAX reference: max abs err = {err}"

    # TODO(synk): dropout is inference-mode identity; BatchNorm uses eval-mode running stats.
    print("KERNEL_OK")
</pallas_src>

<mosaic_0001>
module attributes {stable_mosaic.version = 11 : i64} {
  func.func @fcn_kernel(%arg0: memref<64x76xf32, #tpu.memory_space<vmem>>, %arg1: memref<64x20xf32, #tpu.memory_space<vmem>>, %arg2: memref<32x64xf32, #tpu.memory_space<vmem>>, %arg3: memref<32x1xf32, #tpu.memory_space<vmem>>, %arg4: memref<32x20xf32, #tpu.memory_space<vmem>>, %arg5: memref<32x32xf32, #tpu.memory_space<vmem>>, %arg6: memref<32x1xf32, #tpu.memory_space<vmem>>, %arg7: memref<2x32xf32, #tpu.memory_space<vmem>>, %arg8: memref<58x7xf32, #tpu.memory_space<vmem>>, %arg9: memref<1x1xf32, #tpu.memory_space<vmem>>, %arg10: memref<2x1xf32, #tpu.memory_space<vmem>>) attributes {dimension_semantics = [], scalar_prefetch = 0 : i64, scratch_operands = 0 : i64, tpu.core_type = #tpu.core_type<tc>} {
    %c0 = arith.constant 0 : index
    %c0_0 = arith.constant 0 : index
    %0 = vector.load %arg0[%c0, %c0_0] : memref<64x76xf32, #tpu.memory_space<vmem>>, vector<64x76xf32>
    %c0_1 = arith.constant 0 : index
    %c0_2 = arith.constant 0 : index
    %1 = vector.load %arg1[%c0_1, %c0_2] : memref<64x20xf32, #tpu.memory_space<vmem>>, vector<64x20xf32>
    %2 = vector.extract_strided_slice %1 {offsets = [0, 0], sizes = [64, 1], strides = [1, 1]} : vector<64x20xf32> to vector<64x1xf32>
    %3 = vector.extract_strided_slice %0 {offsets = [0, 0], sizes = [64, 57], strides = [1, 1]} : vector<64x76xf32> to vector<64x57xf32>
    %4 = vector.broadcast %2 : vector<64x1xf32> to vector<64x57xf32>
    %5 = arith.mulf %4, %3 : vector<64x57xf32>
    %6 = vector.extract_strided_slice %1 {offsets = [0, 1], sizes = [64, 1], strides = [1, 1]} : vector<64x20xf32> to vector<64x1xf32>
    %7 = vector.extract_strided_slice %0 {offsets = [0, 1], sizes = [64, 57], strides = [1, 1]} : vector<64x76xf32> to vector<64x57xf32>
    %8 = vector.broadcast %6 : vector<64x1xf32> to vector<64x57xf32>
    %9 = arith.mulf %8, %7 : vector<64x57xf32>
    %10 = arith.addf %5, %9 : vector<64x57xf32>
    %11 = vector.extract_strided_slice %1 {offsets = [0, 2], sizes = [64, 1], strides = [1, 1]} : vector<64x20xf32> to vector<64x1xf32>
    %12 = vector.extract_strided_slice %0 {offsets = [0, 2], sizes = [64, 57], strides = [1, 1]} : vector<64x76xf32> to vector<64x57xf32>
    %13 = vector.broadcast %11 : vector<64x1xf32> to vector<64x57xf32>
    %14 = arith.mulf %13, %12 : vector<64x57xf32>
    %15 = arith.addf %10, %14 : vector<64x57xf32>
    %16 = vector.extract_strided_slice %1 {offsets = [0, 3], sizes = [64, 1], strides = [1, 1]} : vector<64x20xf32> to vector<64x1xf32>
    %17 = vector.extract_strided_slice %0 {offsets = [0, 3], sizes = [64, 57], strides = [1, 1]} : vector<64x76xf32> to vector<64x57xf32>
    %18 = vector.broadcast %16 : vector<64x1xf32> to vector<64x57xf32>
    %19 = arith.mulf %18, %17 : vector<64x57xf32>
    %20 = arith.addf %15, %19 : vector<64x57xf32>
    %21 = vector.extract_strided_slice %1 {offsets = [0, 4], sizes = [64, 1], strides = [1, 1]} : vector<64x20xf32> to vector<64x1xf32>
    %22 = vector.extract_strided_slice %0 {offsets = [0, 4], sizes = [64, 57], strides = [1, 1]} : vector<64x76xf32> to vector<64x57xf32>
    %23 = vector.broadcast %21 : vector<64x1xf32> to vector<64x57xf32>
    %24 = arith.mulf %23, %22 : vector<64x57xf32>
    %25 = arith.addf %20, %24 : vector<64x57xf32>
    %26 = vector.extract_strided_slice %1 {offsets = [0, 5], sizes = [64, 1], strides = [1, 1]} : vector<64x20xf32> to vector<64x1xf32>
    %27 = vector.extract_strided_slice %0 {offsets = [0, 5], sizes = [64, 57], strides = [1, 1]} : vector<64x76xf32> to vector<64x57xf32>
    %28 = vector.broadcast %26 : vector<64x1xf32> to vector<64x57xf32>
    %29 = arith.mulf %28, %27 : vector<64x57xf32>
    %30 = arith.addf %25, %29 : vector<64x57xf32>
    %31 = vector.extract_strided_slice %1 {offsets = [0, 6], sizes = [64, 1], strides = [1, 1]} : vector<64x20xf32> to vector<64x1xf32>
    %32 = vector.extract_strided_slice %0 {offsets = [0, 6], sizes = [64, 57], strides = [1, 1]} : vector<64x76xf32> to vector<64x57xf32>
    %33 = vector.broadcast %31 : vector<64x1xf32> to vector<64x57xf32>
    %34 = arith.mulf %33, %32 : vector<64x57xf32>
    %35 = arith.addf %30, %34 : vector<64x57xf32>
    %36 = vector.extract_strided_slice %1 {offsets = [0, 7], sizes = [64, 1], strides = [1, 1]} : vector<64x20xf32> to vector<64x1xf32>
    %37 = vector.extract_strided_slice %0 {offsets = [0, 7], sizes = [64, 57], strides = [1, 1]} : vector<64x76xf32> to vector<64x57xf32>
    %38 = vector.broadcast %36 : vector<64x1xf32> to vector<64x57xf32>
    %39 = arith.mulf %38, %37 : vector<64x57xf32>
    %40 = arith.addf %35, %39 : vector<64x57xf32>
    %41 = vector.extract_strided_slice %1 {offsets = [0, 8], sizes = [64, 1], strides = [1, 1]} : vector<64x20xf32> to vector<64x1xf32>
    %42 = vector.extract_strided_slice %0 {offsets = [0, 8], sizes = [64, 57], strides = [1, 1]} : vector<64x76xf32> to vector<64x57xf32>
    %43 = vector.broadcast %41 : vector<64x1xf32> to vector<64x57xf32>
    %44 = arith.mulf %43, %42 : vector<64x57xf32>
    %45 = arith.addf %40, %44 : vector<64x57xf32>
    %46 = vector.extract_strided_slice %1 {offsets = [0, 9], sizes = [64, 1], strides = [1, 1]} : vector<64x20xf32> to vector<64x1xf32>
    %47 = vector.extract_strided_slice %0 {offsets = [0, 9], sizes = [64, 57], strides = [1, 1]} : vector<64x76xf32> to vector<64x57xf32>
    %48 = vector.broadcast %46 : vector<64x1xf32> to vector<64x57xf32>
    %49 = arith.mulf %48, %47 : vector<64x57xf32>
    %50 = arith.addf %45, %49 : vector<64x57xf32>
    %51 = vector.extract_strided_slice %1 {offsets = [0, 10], sizes = [64, 1], strides = [1, 1]} : vector<64x20xf32> to vector<64x1xf32>
    %52 = vector.extract_strided_slice %0 {offsets = [0, 10], sizes = [64, 57], strides = [1, 1]} : vector<64x76xf32> to vector<64x57xf32>
    %53 = vector.broadcast %51 : vector<64x1xf32> to vector<64x57xf32>
    %54 = arith.mulf %53, %52 : vector<64x57xf32>
    %55 = arith.addf %50, %54 : vector<64x57xf32>
    %56 = vector.extract_strided_slice %1 {offsets = [0, 11], sizes = [64, 1], strides = [1, 1]} : vector<64x20xf32> to vector<64x1xf32>
    %57 = vector.extract_strided_slice %0 {offsets = [0, 11], sizes = [64, 57], strides = [1, 1]} : vector<64x76xf32> to vector<64x57xf32>
    %58 = vector.broadcast %56 : vector<64x1xf32> to vector<64x57xf32>
    %59 = arith.mulf %58, %57 : vector<64x57xf32>
    %60 = arith.addf %55, %59 : vector<64x57xf32>
    %61 = vector.extract_strided_slice %1 {offsets = [0, 12], sizes = [64, 1], strides = [1, 1]} : vector<64x20xf32> to vector<64x1xf32>
    %62 = vector.extract_strided_slice %0 {offsets = [0, 12], sizes = [64, 57], strides = [1, 1]} : vector<64x76xf32> to vector<64x57xf32>
    %63 = vector.broadcast %61 : vector<64x1xf32> to vector<64x57xf32>
    %64 = arith.mulf %63, %62 : vector<64x57xf32>
    %65 = arith.addf %60, %64 : vector<64x57xf32>
    %66 = vector.extract_strided_slice %1 {offsets = [0, 13], sizes = [64, 1], strides = [1, 1]} : vector<64x20xf32> to vector<64x1xf32>
    %67 = vector.extract_strided_slice %0 {offsets = [0, 13], sizes = [64, 57], strides = [1, 1]} : vector<64x76xf32> to vector<64x57xf32>
    %68 = vector.broadcast %66 : vector<64x1xf32> to vector<64x57xf32>
    %69 = arith.mulf %68, %67 : vector<64x57xf32>
    %70 = arith.addf %65, %69 : vector<64x57xf32>
    %71 = vector.extract_strided_slice %1 {offsets = [0, 14], sizes = [64, 1], strides = [1, 1]} : vector<64x20xf32> to vector<64x1xf32>
    %72 = vector.extract_strided_slice %0 {offsets = [0, 14], sizes = [64, 57], strides = [1, 1]} : vector<64x76xf32> to vector<64x57xf32>
    %73 = vector.broadcast %71 : vector<64x1xf32> to vector<64x57xf32>
    %74 = arith.mulf %73, %72 : vector<64x57xf32>
    %75 = arith.addf %70, %74 : vector<64x57xf32>
    %76 = vector.extract_strided_slice %1 {offsets = [0, 15], sizes = [64, 1], strides = [1, 1]} : vector<64x20xf32> to vector<64x1xf32>
    %77 = vector.extract_strided_slice %0 {offsets = [0, 15], sizes = [64, 57], strides = [1, 1]} : vector<64x76xf32> to vector<64x57xf32>
    %78 = vector.broadcast %76 : vector<64x1xf32> to vector<64x57xf32>
    %79 = arith.mulf %78, %77 : vector<64x57xf32>
    %80 = arith.addf %75, %79 : vector<64x57xf32>
    %81 = vector.extract_strided_slice %1 {offsets = [0, 16], sizes = [64, 1], strides = [1, 1]} : vector<64x20xf32> to vector<64x1xf32>
    %82 = vector.extract_strided_slice %0 {offsets = [0, 16], sizes = [64, 57], strides = [1, 1]} : vector<64x76xf32> to vector<64x57xf32>
    %83 = vector.broadcast %81 : vector<64x1xf32> to vector<64x57xf32>
    %84 = arith.mulf %83, %82 : vector<64x57xf32>
    %85 = arith.addf %80, %84 : vector<64x57xf32>
    %86 = vector.extract_strided_slice %1 {offsets = [0, 17], sizes = [64, 1], strides = [1, 1]} : vector<64x20xf32> to vector<64x1xf32>
    %87 = vector.extract_strided_slice %0 {offsets = [0, 17], sizes = [64, 57], strides = [1, 1]} : vector<64x76xf32> to vector<64x57xf32>
    %88 = vector.broadcast %86 : vector<64x1xf32> to vector<64x57xf32>
    %89 = arith.mulf %88, %87 : vector<64x57xf32>
    %90 = arith.addf %85, %89 : vector<64x57xf32>
    %91 = vector.extract_strided_slice %1 {offsets = [0, 18], sizes = [64, 1], strides = [1, 1]} : vector<64x20xf32> to vector<64x1xf32>
    %92 = vector.extract_strided_slice %0 {offsets = [0, 18], sizes = [64, 57], strides = [1, 1]} : vector<64x76xf32> to vector<64x57xf32>
    %93 = vector.broadcast %91 : vector<64x1xf32> to vector<64x57xf32>
    %94 = arith.mulf %93, %92 : vector<64x57xf32>
    %95 = arith.addf %90, %94 : vector<64x57xf32>
    %96 = vector.extract_strided_slice %1 {offsets = [0, 19], sizes = [64, 1], strides = [1, 1]} : vector<64x20xf32> to vector<64x1xf32>
    %97 = vector.extract_strided_slice %0 {offsets = [0, 19], sizes = [64, 57], strides = [1, 1]} : vector<64x76xf32> to vector<64x57xf32>
    %98 = vector.broadcast %96 : vector<64x1xf32> to vector<64x57xf32>
    %99 = arith.mulf %98, %97 : vector<64x57xf32>
    %100 = arith.addf %95, %99 : vector<64x57xf32>
    %c0_3 = arith.constant 0 : index
    %c0_4 = arith.constant 0 : index
    %101 = vector.load %arg2[%c0_3, %c0_4] : memref<32x64xf32, #tpu.memory_space<vmem>>, vector<32x64xf32>
    %cst = arith.constant dense<0.000000e+00> : vector<32x57xf32>
    %102 = tpu.matmul %101, %100, %cst {dimension_numbers = #tpu.dot_dimension_numbers<[1], [0], [0], [1], [0, 0, 1, 1], [], []>} : vector<32x64xf32>, vector<64x57xf32>, vector<32x57xf32> -> vector<32x57xf32>
    %c0_5 = arith.constant 0 : index
    %c0_6 = arith.constant 0 : index
    %103 = vector.load %arg3[%c0_5, %c0_6] : memref<32x1xf32, #tpu.memory_space<vmem>>, vector<32x1xf32>
    %104 = vector.broadcast %103 : vector<32x1xf32> to vector<32x57xf32>
    %105 = arith.addf %102, %104 : vector<32x57xf32>
    %cst_7 = arith.constant 0.000000e+00 : f32
    %106 = vector.broadcast %cst_7 : f32 to vector<32x57xf32>
    %107 = arith.cmpf ogt, %105, %106 : vector<32x57xf32>
    %108 = math.exp %105 : vector<32x57xf32>
    %cst_8 = arith.constant 1.000000e+00 : f32
    %109 = vector.broadcast %cst_8 : f32 to vector<32x57xf32>
    %110 = arith.subf %108, %109 : vector<32x57xf32>
    %111 = arith.select %107, %105, %110 : vector<32x57xi1>, vector<32x57xf32>
    %cst_9 = arith.constant 0.000000e+00 : f32
    %112 = vector.broadcast %cst_9 : f32 to vector<32x10xf32>
    %113 = tpu.concatenate %112, %111, %112 in 1 : vector<32x10xf32>, vector<32x57xf32>, vector<32x10xf32> -> vector<32x77xf32>
    %c0_10 = arith.constant 0 : index
    %c0_11 = arith.constant 0 : index
    %114 = vector.load %arg4[%c0_10, %c0_11] : memref<32x20xf32, #tpu.memory_space<vmem>>, vector<32x20xf32>
    %115 = vector.extract_strided_slice %114 {offsets = [0, 0], sizes = [32, 1], strides = [1, 1]} : vector<32x20xf32> to vector<32x1xf32>
    %116 = vector.extract_strided_slice %113 {offsets = [0, 0], sizes = [32, 58], strides = [1, 1]} : vector<32x77xf32> to vector<32x58xf32>
    %117 = vector.broadcast %115 : vector<32x1xf32> to vector<32x58xf32>
    %118 = arith.mulf %117, %116 : vector<32x58xf32>
    %119 = vector.extract_strided_slice %114 {offsets = [0, 1], sizes = [32, 1], strides = [1, 1]} : vector<32x20xf32> to vector<32x1xf32>
    %120 = vector.extract_strided_slice %113 {offsets = [0, 1], sizes = [32, 58], strides = [1, 1]} : vector<32x77xf32> to vector<32x58xf32>
    %121 = vector.broadcast %119 : vector<32x1xf32> to vector<32x58xf32>
    %122 = arith.mulf %121, %120 : vector<32x58xf32>
    %123 = arith.addf %118, %122 : vector<32x58xf32>
    %124 = vector.extract_strided_slice %114 {offsets = [0, 2], sizes = [32, 1], strides = [1, 1]} : vector<32x20xf32> to vector<32x1xf32>
    %125 = vector.extract_strided_slice %113 {offsets = [0, 2], sizes = [32, 58], strides = [1, 1]} : vector<32x77xf32> to vector<32x58xf32>
    %126 = vector.broadcast %124 : vector<32x1xf32> to vector<32x58xf32>
    %127 = arith.mulf %126, %125 : vector<32x58xf32>
    %128 = arith.addf %123, %127 : vector<32x58xf32>
    %129 = vector.extract_strided_slice %114 {offsets = [0, 3], sizes = [32, 1], strides = [1, 1]} : vector<32x20xf32> to vector<32x1xf32>
    %130 = vector.extract_strided_slice %113 {offsets = [0, 3], sizes = [32, 58], strides = [1, 1]} : vector<32x77xf32> to vector<32x58xf32>
    %131 = vector.broadcast %129 : vector<32x1xf32> to vector<32x58xf32>
    %132 = arith.mulf %131, %130 : vector<32x58xf32>
    %133 = arith.addf %128, %132 : vector<32x58xf32>
    %134 = vector.extract_strided_slice %114 {offsets = [0, 4], sizes = [32, 1], strides = [1, 1]} : vector<32x20xf32> to vector<32x1xf32>
    %135 = vector.extract_strided_slice %113 {offsets = [0, 4], sizes = [32, 58], strides = [1, 1]} : vector<32x77xf32> to vector<32x58xf32>
    %136 = vector.broadcast %134 : vector<32x1xf32> to vector<32x58xf32>
    %137 = arith.mulf %136, %135 : vector<32x58xf32>
    %138 = arith.addf %133, %137 : vector<32x58xf32>
    %139 = vector.extract_strided_slice %114 {offsets = [0, 5], sizes = [32, 1], strides = [1, 1]} : vector<32x20xf32> to vector<32x1xf32>
    %140 = vector.extract_strided_slice %113 {offsets = [0, 5], sizes = [32, 58], strides = [1, 1]} : vector<32x77xf32> to vector<32x58xf32>
    %141 = vector.broadcast %139 : vector<32x1xf32> to vector<32x58xf32>
    %142 = arith.mulf %141, %140 : vector<32x58xf32>
    %143 = arith.addf %138, %142 : vector<32x58xf32>
    %144 = vector.extract_strided_slice %114 {offsets = [0, 6], sizes = [32, 1], strides = [1, 1]} : vector<32x20xf32> to vector<32x1xf32>
    %145 = vector.extract_strided_slice %113 {offsets = [0, 6], sizes = [32, 58], strides = [1, 1]} : vector<32x77xf32> to vector<32x58xf32>
    %146 = vector.broadcast %144 : vector<32x1xf32> to vector<32x58xf32>
    %147 = arith.mulf %146, %145 : vector<32x58xf32>
    %148 = arith.addf %143, %147 : vector<32x58xf32>
    %149 = vector.extract_strided_slice %114 {offsets = [0, 7], sizes = [32, 1], strides = [1, 1]} : vector<32x20xf32> to vector<32x1xf32>
    %150 = vector.extract_strided_slice %113 {offsets = [0, 7], sizes = [32, 58], strides = [1, 1]} : vector<32x77xf32> to vector<32x58xf32>
    %151 = vector.broadcast %149 : vector<32x1xf32> to vector<32x58xf32>
    %152 = arith.mulf %151, %150 : vector<32x58xf32>
    %153 = arith.addf %148, %152 : vector<32x58xf32>
    %154 = vector.extract_strided_slice %114 {offsets = [0, 8], sizes = [32, 1], strides = [1, 1]} : vector<32x20xf32> to vector<32x1xf32>
    %155 = vector.extract_strided_slice %113 {offsets = [0, 8], sizes = [32, 58], strides = [1, 1]} : vector<32x77xf32> to vector<32x58xf32>
    %156 = vector.broadcast %154 : vector<32x1xf32> to vector<32x58xf32>
    %157 = arith.mulf %156, %155 : vector<32x58xf32>
    %158 = arith.addf %153, %157 : vector<32x58xf32>
    %159 = vector.extract_strided_slice %114 {offsets = [0, 9], sizes = [32, 1], strides = [1, 1]} : vector<32x20xf32> to vector<32x1xf32>
    %160 = vector.extract_strided_slice %113 {offsets = [0, 9], sizes = [32, 58], strides = [1, 1]} : vector<32x77xf32> to vector<32x58xf32>
    %161 = vector.broadcast %159 : vector<32x1xf32> to vector<32x58xf32>
    %162 = arith.mulf %161, %160 : vector<32x58xf32>
    %163 = arith.addf %158, %162 : vector<32x58xf32>
    %164 = vector.extract_strided_slice %114 {offsets = [0, 10], sizes = [32, 1], strides = [1, 1]} : vector<32x20xf32> to vector<32x1xf32>
    %165 = vector.extract_strided_slice %113 {offsets = [0, 10], sizes = [32, 58], strides = [1, 1]} : vector<32x77xf32> to vector<32x58xf32>
    %166 = vector.broadcast %164 : vector<32x1xf32> to vector<32x58xf32>
    %167 = arith.mulf %166, %165 : vector<32x58xf32>
    %168 = arith.addf %163, %167 : vector<32x58xf32>
    %169 = vector.extract_strided_slice %114 {offsets = [0, 11], sizes = [32, 1], strides = [1, 1]} : vector<32x20xf32> to vector<32x1xf32>
    %170 = vector.extract_strided_slice %113 {offsets = [0, 11], sizes = [32, 58], strides = [1, 1]} : vector<32x77xf32> to vector<32x58xf32>
    %171 = vector.broadcast %169 : vector<32x1xf32> to vector<32x58xf32>
    %172 = arith.mulf %171, %170 : vector<32x58xf32>
    %173 = arith.addf %168, %172 : vector<32x58xf32>
    %174 = vector.extract_strided_slice %114 {offsets = [0, 12], sizes = [32, 1], strides = [1, 1]} : vector<32x20xf32> to vector<32x1xf32>
    %175 = vector.extract_strided_slice %113 {offsets = [0, 12], sizes = [32, 58], strides = [1, 1]} : vector<32x77xf32> to vector<32x58xf32>
    %176 = vector.broadcast %174 : vector<32x1xf32> to vector<32x58xf32>
    %177 = arith.mulf %176, %175 : vector<32x58xf32>
    %178 = arith.addf %173, %177 : vector<32x58xf32>
    %179 = vector.extract_strided_slice %114 {offsets = [0, 13], sizes = [32, 1], strides = [1, 1]} : vector<32x20xf32> to vector<32x1xf32>
    %180 = vector.extract_strided_slice %113 {offsets = [0, 13], sizes = [32, 58], strides = [1, 1]} : vector<32x77xf32> to vector<32x58xf32>
    %181 = vector.broadcast %179 : vector<32x1xf32> to vector<32x58xf32>
    %182 = arith.mulf %181, %180 : vector<32x58xf32>
    %183 = arith.addf %178, %182 : vector<32x58xf32>
    %184 = vector.extract_strided_slice %114 {offsets = [0, 14], sizes = [32, 1], strides = [1, 1]} : vector<32x20xf32> to vector<32x1xf32>
    %185 = vector.extract_strided_slice %113 {offsets = [0, 14], sizes = [32, 58], strides = [1, 1]} : vector<32x77xf32> to vector<32x58xf32>
    %186 = vector.broadcast %184 : vector<32x1xf32> to vector<32x58xf32>
    %187 = arith.mulf %186, %185 : vector<32x58xf32>
    %188 = arith.addf %183, %187 : vector<32x58xf32>
    %189 = vector.extract_strided_slice %114 {offsets = [0, 15], sizes = [32, 1], strides = [1, 1]} : vector<32x20xf32> to vector<32x1xf32>
    %190 = vector.extract_strided_slice %113 {offsets = [0, 15], sizes = [32, 58], strides = [1, 1]} : vector<32x77xf32> to vector<32x58xf32>
    %191 = vector.broadcast %189 : vector<32x1xf32> to vector<32x58xf32>
    %192 = arith.mulf %191, %190 : vector<32x58xf32>
    %193 = arith.addf %188, %192 : vector<32x58xf32>
    %194 = vector.extract_strided_slice %114 {offsets = [0, 16], sizes = [32, 1], strides = [1, 1]} : vector<32x20xf32> to vector<32x1xf32>
    %195 = vector.extract_strided_slice %113 {offsets = [0, 16], sizes = [32, 58], strides = [1, 1]} : vector<32x77xf32> to vector<32x58xf32>
    %196 = vector.broadcast %194 : vector<32x1xf32> to vector<32x58xf32>
    %197 = arith.mulf %196, %195 : vector<32x58xf32>
    %198 = arith.addf %193, %197 : vector<32x58xf32>
    %199 = vector.extract_strided_slice %114 {offsets = [0, 17], sizes = [32, 1], strides = [1, 1]} : vector<32x20xf32> to vector<32x1xf32>
    %200 = vector.extract_strided_slice %113 {offsets = [0, 17], sizes = [32, 58], strides = [1, 1]} : vector<32x77xf32> to vector<32x58xf32>
    %201 = vector.broadcast %199 : vector<32x1xf32> to vector<32x58xf32>
    %202 = arith.mulf %201, %200 : vector<32x58xf32>
    %203 = arith.addf %198, %202 : vector<32x58xf32>
    %204 = vector.extract_strided_slice %114 {offsets = [0, 18], sizes = [32, 1], strides = [1, 1]} : vector<32x20xf32> to vector<32x1xf32>
    %205 = vector.extract_strided_slice %113 {offsets = [0, 18], sizes = [32, 58], strides = [1, 1]} : vector<32x77xf32> to vector<32x58xf32>
    %206 = vector.broadcast %204 : vector<32x1xf32> to vector<32x58xf32>
    %207 = arith.mulf %206, %205 : vector<32x58xf32>
    %208 = arith.addf %203, %207 : vector<32x58xf32>
    %209 = vector.extract_strided_slice %114 {offsets = [0, 19], sizes = [32, 1], strides = [1, 1]} : vector<32x20xf32> to vector<32x1xf32>
    %210 = vector.extract_strided_slice %113 {offsets = [0, 19], sizes = [32, 58], strides = [1, 1]} : vector<32x77xf32> to vector<32x58xf32>
    %211 = vector.broadcast %209 : vector<32x1xf32> to vector<32x58xf32>
    %212 = arith.mulf %211, %210 : vector<32x58xf32>
    %213 = arith.addf %208, %212 : vector<32x58xf32>
    %c0_12 = arith.constant 0 : index
    %c0_13 = arith.constant 0 : index
    %214 = vector.load %arg5[%c0_12, %c0_13] : memref<32x32xf32, #tpu.memory_space<vmem>>, vector<32x32xf32>
    %cst_14 = arith.constant dense<0.000000e+00> : vector<32x58xf32>
    %215 = tpu.matmul %214, %213, %cst_14 {dimension_numbers = #tpu.dot_dimension_numbers<[1], [0], [0], [1], [0, 0, 1, 1], [], []>} : vector<32x32xf32>, vector<32x58xf32>, vector<32x58xf32> -> vector<32x58xf32>
    %c0_15 = arith.constant 0 : index
    %c0_16 = arith.constant 0 : index
    %216 = vector.load %arg6[%c0_15, %c0_16] : memref<32x1xf32, #tpu.memory_space<vmem>>, vector<32x1xf32>
    %217 = vector.broadcast %216 : vector<32x1xf32> to vector<32x58xf32>
    %218 = arith.addf %215, %217 : vector<32x58xf32>
    %cst_17 = arith.constant 0.000000e+00 : f32
    %219 = vector.broadcast %cst_17 : f32 to vector<32x58xf32>
    %220 = arith.cmpf ogt, %218, %219 : vector<32x58xf32>
    %221 = math.exp %218 : vector<32x58xf32>
    %cst_18 = arith.constant 1.000000e+00 : f32
    %222 = vector.broadcast %cst_18 : f32 to vector<32x58xf32>
    %223 = arith.subf %221, %222 : vector<32x58xf32>
    %224 = arith.select %220, %218, %223 : vector<32x58xi1>, vector<32x58xf32>
    %c0_19 = arith.constant 0 : index
    %c0_20 = arith.constant 0 : index
    %225 = vector.load %arg7[%c0_19, %c0_20] : memref<2x32xf32, #tpu.memory_space<vmem>>, vector<2x32xf32>
    %cst_21 = arith.constant dense<0.000000e+00> : vector<2x58xf32>
    %226 = tpu.matmul %225, %224, %cst_21 {dimension_numbers = #tpu.dot_dimension_numbers<[1], [0], [0], [1], [0, 0, 1, 1], [], []>} : vector<2x32xf32>, vector<32x58xf32>, vector<2x58xf32> -> vector<2x58xf32>
    %c0_22 = arith.constant 0 : index
    %c0_23 = arith.constant 0 : index
    %227 = vector.load %arg8[%c0_22, %c0_23] : memref<58x7xf32, #tpu.memory_space<vmem>>, vector<58x7xf32>
    %cst_24 = arith.constant dense<0.000000e+00> : vector<2x7xf32>
    %228 = tpu.matmul %226, %227, %cst_24 {dimension_numbers = #tpu.dot_dimension_numbers<[1], [0], [0], [1], [0, 0, 1, 1], [], []>} : vector<2x58xf32>, vector<58x7xf32>, vector<2x7xf32> -> vector<2x7xf32>
    %cst_25 = arith.constant dense<0xFF800000> : vector<2xf32>
    %229 = vector.multi_reduction <maximumf>, %228, %cst_25 [1] : vector<2x7xf32> to vector<2xf32>
    %230 = vector.shape_cast %229 : vector<2xf32> to vector<2x1xf32>
    %c0_26 = arith.constant 0 : index
    %c0_27 = arith.constant 0 : index
    %231 = vector.load %arg9[%c0_26, %c0_27] : memref<1x1xf32, #tpu.memory_space<vmem>>, vector<1x1xf32>
    %232 = vector.broadcast %231 : vector<1x1xf32> to vector<2x1xf32>
    %233 = arith.addf %230, %232 : vector<2x1xf32>
    %c0_28 = arith.constant 0 : index
    %c0_29 = arith.constant 0 : index
    %234 = vector.load %arg10[%c0_28, %c0_29] : memref<2x1xf32, #tpu.memory_space<vmem>>, vector<2x1xf32>
    tpu.vector_store %arg10[%c0_28, %c0_29], %233 {strides = array<i32>} : memref<2x1xf32, #tpu.memory_space<vmem>>, vector<2x1xf32>,
    return
  }
}

</mosaic_0001>

<llo_original>
// kernel: tile.17
$region0: #{tile.17}
  #allocation0 [shape = 's32[1]{0}', space=sflag, size = 0x4, scoped, tag = 'scoped memory for tile.17']
  %s0 = inlined_call_operand.vmem [shape: f32[16], index: 0, kind: input, shape index: {}]
  %s1 = inlined_call_operand.vmem [shape: f32[2,16], index: 1, kind: output, shape index: {}]
  // Predicated region
  $region2: #{tile.17} parent=0 // pred_check
    _
  $region3: #{tile.17} parent=0 // pred_check_branch
    %3 = sbr.rel (0) target = $region5
  $region4: #{tile.17} parent=0 // pred_region
    _
  $region5: #{tile.17} parent=0 // pred_fallthru
    _
  %v4 = vld [vmem:[%s0] ss:$0 sm:$0xff]
  %5 = vst [vmem:[%s1] sm:$0x3] %v4

// kernel: tile.0
$region0: #{tile.0}
  %s0 = inlined_call_operand.vmem [shape: f32[2,16], index: 0, kind: input, shape index: {}]
  %s1 = inlined_call_operand.vmem [shape: f32[32,1], index: 1, kind: output, shape index: {}]
  $region1: #{tile.0} parent=0
    #allocation0 [shape = 'u8[4096]{0}', space=vmem, size = 0x1000, scoped, tag = 'scoped mem for input reshape']
    %s3 = sshllo.u32 0, 2
    %v4 = vld [vmem:[%s0] sm:%s3]
    %5 = vst [vmem:[#allocation0] sm:%s3] %v4
    %v6 = vld [vmem:[#allocation0] sm:$0x3]
    %vm7 = vcmask 7168
    %8 = vst.msk [vmem:[%s1] ss:$16 sm:$0x3] %vm7, %v6
    %v9 = vld [vmem:[#allocation0] sm:$0x3]
    %10 = vrot.lane.b32.xlu0 %v9, 127
    %v11 = vpop.permute.xlu0 %10
    %vm12 = vcmask 7168
    %s13 = scalar_lea.vmem %s1, 1
    %14 = vst.msk [vmem:[%s13] ss:$16 sm:$0x3] %vm12, %v11
    %v15 = vld [vmem:[#allocation0] sm:$0x3]
    %16 = vrot.lane.b32.xlu0 %v15, 126
    %v17 = vpop.permute.xlu0 %16
    %vm18 = vcmask 7168
    %s19 = scalar_lea.vmem %s1, 2
    %20 = vst.msk [vmem:[%s19] ss:$16 sm:$0x3] %vm18, %v17
    %v21 = vld [vmem:[#allocation0] sm:$0x3]
    %22 = vrot.lane.b32.xlu0 %v21, 125
    %v23 = vpop.permute.xlu0 %22
    %vm24 = vcmask 7168
    %s25 = scalar_lea.vmem %s1, 3
    %26 = vst.msk [vmem:[%s25] ss:$16 sm:$0x3] %vm24, %v23
    %v27 = vld [vmem:[#allocation0] sm:$0x3]
    %28 = vrot.lane.b32.xlu0 %v27, 124
    %v29 = vpop.permute.xlu0 %28
    %vm30 = vcmask 7168
    %s31 = scalar_lea.vmem %s1, 4
    %32 = vst.msk [vmem:[%s31] ss:$16 sm:$0x3] %vm30, %v29
    %v33 = vld [vmem:[#allocation0] sm:$0x3]
    %34 = vrot.lane.b32.xlu0 %v33, 123
    %v35 = vpop.permute.xlu0 %34
    %vm36 = vcmask 7168
    %s37 = scalar_lea.vmem %s1, 5
    %38 = vst.msk [vmem:[%s37] ss:$16 sm:$0x3] %vm36, %v35
    %v39 = vld [vmem:[#allocation0] sm:$0x3]
    %40 = vrot.lane.b32.xlu0 %v39, 122
    %v41 = vpop.permute.xlu0 %40
    %vm42 = vcmask 7168
    %s43 = scalar_lea.vmem %s1, 6
    %44 = vst.msk [vmem:[%s43] ss:$16 sm:$0x3] %vm42, %v41
    %v45 = vld [vmem:[#allocation0] sm:$0x3]
    %46 = vrot.lane.b32.xlu0 %v45, 121
    %v47 = vpop.permute.xlu0 %46
    %vm48 = vcmask 7168
    %s49 = scalar_lea.vmem %s1, 7
    %50 = vst.msk [vmem:[%s49] ss:$16 sm:$0x3] %vm48, %v47
    %v51 = vld [vmem:[#allocation0] sm:$0x3]
    %52 = vrot.lane.b32.xlu0 %v51, 120
    %v53 = vpop.permute.xlu0 %52
    %vm54 = vcmask 7168
    %s55 = scalar_lea.vmem %s1, 8
    %56 = vst.msk [vmem:[%s55] ss:$16 sm:$0x3] %vm54, %v53
    %v57 = vld [vmem:[#allocation0] sm:$0x3]
    %58 = vrot.lane.b32.xlu0 %v57, 119
    %v59 = vpop.permute.xlu0 %58
    %vm60 = vcmask 7168
    %s61 = scalar_lea.vmem %s1, 9
    %62 = vst.msk [vmem:[%s61] ss:$16 sm:$0x3] %vm60, %v59
    %v63 = vld [vmem:[#allocation0] sm:$0x3]
    %64 = vrot.lane.b32.xlu0 %v63, 118
    %v65 = vpop.permute.xlu0 %64
    %vm66 = vcmask 7168
    %s67 = scalar_lea.vmem %s1, 10
    %68 = vst.msk [vmem:[%s67] ss:$16 sm:$0x3] %vm66, %v65
    %v69 = vld [vmem:[#allocation0] sm:$0x3]
    %70 = vrot.lane.b32.xlu0 %v69, 117
    %v71 = vpop.permute.xlu0 %70
    %vm72 = vcmask 7168
    %s73 = scalar_lea.vmem %s1, 11
    %74 = vst.msk [vmem:[%s73] ss:$16 sm:$0x3] %vm72, %v71
    %v75 = vld [vmem:[#allocation0] sm:$0x3]
    %76 = vrot.lane.b32.xlu0 %v75, 116
    %v77 = vpop.permute.xlu0 %76
    %vm78 = vcmask 7168
    %s79 = scalar_lea.vmem %s1, 12
    %80 = vst.msk [vmem:[%s79] ss:$16 sm:$0x3] %vm78, %v77
    %v81 = vld [vmem:[#allocation0] sm:$0x3]
    %82 = vrot.lane.b32.xlu0 %v81, 115
    %v83 = vpop.permute.xlu0 %82
    %vm84 = vcmask 7168
    %s85 = scalar_lea.vmem %s1, 13
    %86 = vst.msk [vmem:[%s85] ss:$16 sm:$0x3] %vm84, %v83
    %v87 = vld [vmem:[#allocation0] sm:$0x3]
    %88 = vrot.lane.b32.xlu0 %v87, 114
    %v89 = vpop.permute.xlu0 %88
    %vm90 = vcmask 7168
    %s91 = scalar_lea.vmem %s1, 14
    %92 = vst.msk [vmem:[%s91] ss:$16 sm:$0x3] %vm90, %v89
    %v93 = vld [vmem:[#allocation0] sm:$0x3]
    %94 = vrot.lane.b32.xlu0 %v93, 113
    %v95 = vpop.permute.xlu0 %94
    %vm96 = vcmask 7168
    %s97 = scalar_lea.vmem %s1, 15
    %98 = vst.msk [vmem:[%s97] ss:$16 sm:$0x3] %vm96, %v95

// kernel: fcn_forward_pallas.1
$region0: #{fcn_forward_pallas.1}
  #allocation0 [shape = 'u32[]', space=smem, size = 0x4, offset = 0x4, fixed_abs, tag = 'smem constant byte address 0x4 - core index']
  #allocation1 [shape = 'u32[144,128]{1,0:T(1,128)}', space=vmem, size = 0x12000, scoped, tag = 'internal scratch']
  #allocation2 [shape = 'f32[1,1]{1,0:T(1,128)S(1)}', space=vmem, size = 0x200, scoped, tag = 'scoped memory for fcn_forward_pallas.1']
  %s0 = inlined_call_operand.vmem [shape: f32[64,76], index: 0, kind: input, shape index: {}]
  %s1 = inlined_call_operand.vmem [shape: f32[64,20], index: 1, kind: input, shape index: {}]
  %s2 = inlined_call_operand.vmem [shape: f32[32,64], index: 2, kind: input, shape index: {}]
  %s3 = inlined_call_operand.vmem [shape: f32[32,1], index: 3, kind: input, shape index: {}]
  %s4 = inlined_call_operand.vmem [shape: f32[32,20], index: 4, kind: input, shape index: {}]
  %s5 = inlined_call_operand.vmem [shape: f32[32,32], index: 5, kind: input, shape index: {}]
  %s6 = inlined_call_operand.vmem [shape: f32[32,1], index: 6, kind: input, shape index: {}]
  %s7 = inlined_call_operand.vmem [shape: f32[2,32], index: 7, kind: input, shape index: {}]
  %s8 = inlined_call_operand.vmem [shape: f32[58,7], index: 8, kind: input, shape index: {}]
  %s9 = inlined_call_operand.<no memory space> [shape: f32[1,1], index: 9, kind: input, shape index: {}]
  %s10 = inlined_call_operand.vmem [shape: f32[2,1], index: 10, kind: output, shape index: {}]
  %s11 = sld [smem:[#allocation0]]
  $region50: #{fcn_forward_pallas.1} parent=0
    _
  %s13 = ssub.s32 1, %s11
  %s14 = scalar_select 0, %s13, %s11
  %v15 = vstv %s9
  %16 = vst [vmem:[#allocation2] sm:$0x1] %v15
  // Predicated region
  $region2: #{fcn_forward_pallas.1} parent=0 // pred_check
    _
  $region3: #{fcn_forward_pallas.1} parent=0 // pred_check_branch
    %18 = sbr.rel (0) target = $region5
  $region4: #{fcn_forward_pallas.1} parent=0 // pred_region
    _
  $region5: #{fcn_forward_pallas.1} parent=0 // pred_fallthru
    _
  // Predicated region
  $region6: #{fcn_forward_pallas.1} parent=0 // pred_check
    _
  $region7: #{fcn_forward_pallas.1} parent=0 // pred_check_branch
    %20 = sbr.rel (0) target = $region9
  $region8: #{fcn_forward_pallas.1} parent=0 // pred_region
    _
  $region9: #{fcn_forward_pallas.1} parent=0 // pred_fallthru
    _
  // Predicated region
  $region10: #{fcn_forward_pallas.1} parent=0 // pred_check
    _
  $region11: #{fcn_forward_pallas.1} parent=0 // pred_check_branch
    %22 = sbr.rel (0) target = $region13
  $region12: #{fcn_forward_pallas.1} parent=0 // pred_region
    _
  $region13: #{fcn_forward_pallas.1} parent=0 // pred_fallthru
    _
  // Predicated region
  $region14: #{fcn_forward_pallas.1} parent=0 // pred_check
    _
  $region15: #{fcn_forward_pallas.1} parent=0 // pred_check_branch
    %24 = sbr.rel (0) target = $region17
  $region16: #{fcn_forward_pallas.1} parent=0 // pred_region
    _
  $region17: #{fcn_forward_pallas.1} parent=0 // pred_fallthru
    _
  // Predicated region
  $region18: #{fcn_forward_pallas.1} parent=0 // pred_check
    _
  $region19: #{fcn_forward_pallas.1} parent=0 // pred_check_branch
    %26 = sbr.rel (0) target = $region21
  $region20: #{fcn_forward_pallas.1} parent=0 // pred_region
    _
  $region21: #{fcn_forward_pallas.1} parent=0 // pred_fallthru
    _
  // Predicated region
  $region22: #{fcn_forward_pallas.1} parent=0 // pred_check
    _
  $region23: #{fcn_forward_pallas.1} parent=0 // pred_check_branch
    %28 = sbr.rel (0) target = $region25
  $region24: #{fcn_forward_pallas.1} parent=0 // pred_region
    _
  $region25: #{fcn_forward_pallas.1} parent=0 // pred_fallthru
    _
  // Predicated region
  $region26: #{fcn_forward_pallas.1} parent=0 // pred_check
    _
  $region27: #{fcn_forward_pallas.1} parent=0 // pred_check_branch
    %30 = sbr.rel (0) target = $region29
  $region28: #{fcn_forward_pallas.1} parent=0 // pred_region
    _
  $region29: #{fcn_forward_pallas.1} parent=0 // pred_fallthru
    _
  // Predicated region
  $region30: #{fcn_forward_pallas.1} parent=0 // pred_check
    _
  $region31: #{fcn_forward_pallas.1} parent=0 // pred_check_branch
    %32 = sbr.rel (0) target = $region33
  $region32: #{fcn_forward_pallas.1} parent=0 // pred_region
    _
  $region33: #{fcn_forward_pallas.1} parent=0 // pred_fallthru
    _
  // Predicated region
  $region34: #{fcn_forward_pallas.1} parent=0 // pred_check
    _
  $region35: #{fcn_forward_pallas.1} parent=0 // pred_check_branch
    %34 = sbr.rel (0) target = $region37
  $region36: #{fcn_forward_pallas.1} parent=0 // pred_region
    _
  $region37: #{fcn_forward_pallas.1} parent=0 // pred_fallthru
    _
  // Predicated region
  $region38: #{fcn_forward_pallas.1} parent=0 // pred_check
    _
  $region39: #{fcn_forward_pallas.1} parent=0 // pred_check_branch
    %36 = sbr.rel (0) target = $region41
  $region40: #{fcn_forward_pallas.1} parent=0 // pred_region
    _
  $region41: #{fcn_forward_pallas.1} parent=0 // pred_fallthru
    _
  %v37 = vld [vmem:[%s0] sm:$0xff]
  %v38 = vld [vmem:[%s0 + $0x8] sm:$0xff]
  %v39 = vld [vmem:[%s0 + $0x10] sm:$0xff]
  %v40 = vld [vmem:[%s0 + $0x18] sm:$0xff]
  %v41 = vld [vmem:[%s0 + $0x20] sm:$0xff]
  %v42 = vld [vmem:[%s0 + $0x28] sm:$0xff]
  %v43 = vld [vmem:[%s0 + $0x30] sm:$0xff]
  %v44 = vld [vmem:[%s0 + $0x38] sm:$0xff]
  %v45 = vld [vmem:[%s1] sm:$0xff]
  %v46 = vld [vmem:[%s1 + $0x8] sm:$0xff]
  %v47 = vld [vmem:[%s1 + $0x10] sm:$0xff]
  %v48 = vld [vmem:[%s1 + $0x18] sm:$0xff]
  %v49 = vld [vmem:[%s1 + $0x20] sm:$0xff]
  %v50 = vld [vmem:[%s1 + $0x28] sm:$0xff]
  %v51 = vld [vmem:[%s1 + $0x30] sm:$0xff]
  %v52 = vld [vmem:[%s1 + $0x38] sm:$0xff]
  %54 = vset.pattern.permute.xlu0 0
  %55 = vperm.xlu0 %54, %v45
  %v56 = vpop.permute.xlu0 %55
  %59 = vset.pattern.permute.xlu0 0
  %60 = vperm.xlu0 %59, %v46
  %v61 = vpop.permute.xlu0 %60
  %64 = vset.pattern.permute.xlu0 0
  %65 = vperm.xlu0 %64, %v47
  %v66 = vpop.permute.xlu0 %65
  %69 = vset.pattern.permute.xlu0 0
  %70 = vperm.xlu0 %69, %v48
  %v71 = vpop.permute.xlu0 %70
  %74 = vset.pattern.permute.xlu0 0
  %75 = vperm.xlu0 %74, %v49
  %v76 = vpop.permute.xlu0 %75
  %79 = vset.pattern.permute.xlu0 0
  %80 = vperm.xlu0 %79, %v50
  %v81 = vpop.permute.xlu0 %80
  %84 = vset.pattern.permute.xlu0 0
  %85 = vperm.xlu0 %84, %v51
  %v86 = vpop.permute.xlu0 %85
  %89 = vset.pattern.permute.xlu0 0
  %90 = vperm.xlu0 %89, %v52
  %v91 = vpop.permute.xlu0 %90
  %v93 = vmul.f32 %v56, %v37
  %v94 = vmul.f32 %v61, %v38
  %v95 = vmul.f32 %v66, %v39
  %v96 = vmul.f32 %v71, %v40
  %v97 = vmul.f32 %v76, %v41
  %v98 = vmul.f32 %v81, %v42
  %v99 = vmul.f32 %v86, %v43
  %v100 = vmul.f32 %v91, %v44
  %101 = vset.pattern.permute.xlu0 1
  %102 = vperm.xlu0 %101, %v45
  %v103 = vpop.permute.xlu0 %102
  %105 = vset.pattern.permute.xlu0 1
  %106 = vperm.xlu0 %105, %v46
  %v107 = vpop.permute.xlu0 %106
  %109 = vset.pattern.permute.xlu0 1
  %110 = vperm.xlu0 %109, %v47
  %v111 = vpop.permute.xlu0 %110
  %113 = vset.pattern.permute.xlu0 1
  %114 = vperm.xlu0 %113, %v48
  %v115 = vpop.permute.xlu0 %114
  %117 = vset.pattern.permute.xlu0 1
  %118 = vperm.xlu0 %117, %v49
  %v119 = vpop.permute.xlu0 %118
  %121 = vset.pattern.permute.xlu0 1
  %122 = vperm.xlu0 %121, %v50
  %v123 = vpop.permute.xlu0 %122
  %125 = vset.pattern.permute.xlu0 1
  %126 = vperm.xlu0 %125, %v51
  %v127 = vpop.permute.xlu0 %126
  %129 = vset.pattern.permute.xlu0 1
  %130 = vperm.xlu0 %129, %v52
  %v131 = vpop.permute.xlu0 %130
  %v133 = vmul.f32 %v103, %v37
  %v134 = vmul.f32 %v107, %v38
  %v135 = vmul.f32 %v111, %v39
  %v136 = vmul.f32 %v115, %v40
  %v137 = vmul.f32 %v119, %v41
  %v138 = vmul.f32 %v123, %v42
  %v139 = vmul.f32 %v127, %v43
  %v140 = vmul.f32 %v131, %v44
  %149 = vrot.lane.b32.xlu0 %v133, 127
  %v150 = vpop.permute.xlu0 %149
  %151 = vrot.lane.b32.xlu0 %v134, 127
  %v152 = vpop.permute.xlu0 %151
  %153 = vrot.lane.b32.xlu0 %v135, 127
  %v154 = vpop.permute.xlu0 %153
  %155 = vrot.lane.b32.xlu0 %v136, 127
  %v156 = vpop.permute.xlu0 %155
  %157 = vrot.lane.b32.xlu0 %v137, 127
  %v158 = vpop.permute.xlu0 %157
  %159 = vrot.lane.b32.xlu0 %v138, 127
  %v160 = vpop.permute.xlu0 %159
  %161 = vrot.lane.b32.xlu0 %v139, 127
  %v162 = vpop.permute.xlu0 %161
  %163 = vrot.lane.b32.xlu0 %v140, 127
  %v164 = vpop.permute.xlu0 %163
  %v173 = vadd.f32 %v93, %v150
  %v174 = vadd.f32 %v94, %v152
  %v175 = vadd.f32 %v95, %v154
  %v176 = vadd.f32 %v96, %v156
  %v177 = vadd.f32 %v97, %v158
  %v178 = vadd.f32 %v98, %v160
  %v179 = vadd.f32 %v99, %v162
  %v180 = vadd.f32 %v100, %v164
  %181 = vset.pattern.permute.xlu0 2
  %182 = vperm.xlu0 %181, %v45
  %v183 = vpop.permute.xlu0 %182
  %185 = vset.pattern.permute.xlu0 2
  %186 = vperm.xlu0 %185, %v46
  %v187 = vpop.permute.xlu0 %186
  %189 = vset.pattern.permute.xlu0 2
  %190 = vperm.xlu0 %189, %v47
  %v191 = vpop.permute.xlu0 %190
  %193 = vset.pattern.permute.xlu0 2
  %194 = vperm.xlu0 %193, %v48
  %v195 = vpop.permute.xlu0 %194
  %197 = vset.pattern.permute.xlu0 2
  %198 = vperm.xlu0 %197, %v49
  %v199 = vpop.permute.xlu0 %198
  %201 = vset.pattern.permute.xlu0 2
  %202 = vperm.xlu0 %201, %v50
  %v203 = vpop.permute.xlu0 %202
  %205 = vset.pattern.permute.xlu0 2
  %206 = vperm.xlu0 %205, %v51
  %v207 = vpop.permute.xlu0 %206
  %209 = vset.pattern.permute.xlu0 2
  %210 = vperm.xlu0 %209, %v52
  %v211 = vpop.permute.xlu0 %210
  %v213 = vmul.f32 %v183, %v37
  %v214 = vmul.f32 %v187, %v38
  %v215 = vmul.f32 %v191, %v39
  %v216 = vmul.f32 %v195, %v40
  %v217 = vmul.f32 %v199, %v41
  %v218 = vmul.f32 %v203, %v42
  %v219 = vmul.f32 %v207, %v43
  %v220 = vmul.f32 %v211, %v44
  %229 = vrot.lane.b32.xlu0 %v213, 126
  %v230 = vpop.permute.xlu0 %229
  %231 = vrot.lane.b32.xlu0 %v214, 126
  %v232 = vpop.permute.xlu0 %231
  %233 = vrot.lane.b32.xlu0 %v215, 126
  %v234 = vpop.permute.xlu0 %233
  %235 = vrot.lane.b32.xlu0 %v216, 126
  %v236 = vpop.permute.xlu0 %235
  %237 = vrot.lane.b32.xlu0 %v217, 126
  %v238 = vpop.permute.xlu0 %237
  %239 = vrot.lane.b32.xlu0 %v218, 126
  %v240 = vpop.permute.xlu0 %239
  %241 = vrot.lane.b32.xlu0 %v219, 126
  %v242 = vpop.permute.xlu0 %241
  %243 = vrot.lane.b32.xlu0 %v220, 126
  %v244 = vpop.permute.xlu0 %243
  %v253 = vadd.f32 %v173, %v230
  %v254 = vadd.f32 %v174, %v232
  %v255 = vadd.f32 %v175, %v234
  %v256 = vadd.f32 %v176, %v236
  %v257 = vadd.f32 %v177, %v238
  %v258 = vadd.f32 %v178, %v240
  %v259 = vadd.f32 %v179, %v242
  %v260 = vadd.f32 %v180, %v244
  %261 = vset.pattern.permute.xlu0 3
  %262 = vperm.xlu0 %261, %v45
  %v263 = vpop.permute.xlu0 %262
  %265 = vset.pattern.permute.xlu0 3
  %266 = vperm.xlu0 %265, %v46
  %v267 = vpop.permute.xlu0 %266
  %269 = vset.pattern.permute.xlu0 3
  %270 = vperm.xlu0 %269, %v47
  %v271 = vpop.permute.xlu0 %270
  %273 = vset.pattern.permute.xlu0 3
  %274 = vperm.xlu0 %273, %v48
  %v275 = vpop.permute.xlu0 %274
  %277 = vset.pattern.permute.xlu0 3
  %278 = vperm.xlu0 %277, %v49
  %v279 = vpop.permute.xlu0 %278
  %281 = vset.pattern.permute.xlu0 3
  %282 = vperm.xlu0 %281, %v50
  %v283 = vpop.permute.xlu0 %282
  %285 = vset.pattern.permute.xlu0 3
  %286 = vperm.xlu0 %285, %v51
  %v287 = vpop.permute.xlu0 %286
  %289 = vset.pattern.permute.xlu0 3
  %290 = vperm.xlu0 %289, %v52
  %v291 = vpop.permute.xlu0 %290
  %v293 = vmul.f32 %v263, %v37
  %v294 = vmul.f32 %v267, %v38
  %v295 = vmul.f32 %v271, %v39
  %v296 = vmul.f32 %v275, %v40
  %v297 = vmul.f32 %v279, %v41
  %v298 = vmul.f32 %v283, %v42
  %v299 = vmul.f32 %v287, %v43
  %v300 = vmul.f32 %v291, %v44
  %309 = vrot.lane.b32.xlu0 %v293, 125
  %v310 = vpop.permute.xlu0 %309
  %311 = vrot.lane.b32.xlu0 %v294, 125
  %v312 = vpop.permute.xlu0 %311
  %313 = vrot.lane.b32.xlu0 %v295, 125
  %v314 = vpop.permute.xlu0 %313
  %315 = vrot.lane.b32.xlu0 %v296, 125
  %v316 = vpop.permute.xlu0 %315
  %317 = vrot.lane.b32.xlu0 %v297, 125
  %v318 = vpop.permute.xlu0 %317
  %319 = vrot.lane.b32.xlu0 %v298, 125
  %v320 = vpop.permute.xlu0 %319
  %321 = vrot.lane.b32.xlu0 %v299, 125
  %v322 = vpop.permute.xlu0 %321
  %323 = vrot.lane.b32.xlu0 %v300, 125
  %v324 = vpop.permute.xlu0 %323
  %v333 = vadd.f32 %v253, %v310
  %v334 = vadd.f32 %v254, %v312
  %v335 = vadd.f32 %v255, %v314
  %v336 = vadd.f32 %v256, %v316
  %v337 = vadd.f32 %v257, %v318
  %v338 = vadd.f32 %v258, %v320
  %v339 = vadd.f32 %v259, %v322
  %v340 = vadd.f32 %v260, %v324
  %341 = vset.pattern.permute.xlu0 4
  %342 = vperm.xlu0 %341, %v45
  %v343 = vpop.permute.xlu0 %342
  %345 = vset.pattern.permute.xlu0 4
  %346 = vperm.xlu0 %345, %v46
  %v347 = vpop.permute.xlu0 %346
  %349 = vset.pattern.permute.xlu0 4
  %350 = vperm.xlu0 %349, %v47
  %v351 = vpop.permute.xlu0 %350
  %353 = vset.pattern.permute.xlu0 4
  %354 = vperm.xlu0 %353, %v48
  %v355 = vpop.permute.xlu0 %354
  %357 = vset.pattern.permute.xlu0 4
  %358 = vperm.xlu0 %357, %v49
  %v359 = vpop.permute.xlu0 %358
  %361 = vset.pattern.permute.xlu0 4
  %362 = vperm.xlu0 %361, %v50
  %v363 = vpop.permute.xlu0 %362
  %365 = vset.pattern.permute.xlu0 4
  %366 = vperm.xlu0 %365, %v51
  %v367 = vpop.permute.xlu0 %366
  %369 = vset.pattern.permute.xlu0 4
  %370 = vperm.xlu0 %369, %v52
  %v371 = vpop.permute.xlu0 %370
  %v373 = vmul.f32 %v343, %v37
  %v374 = vmul.f32 %v347, %v38
  %v375 = vmul.f32 %v351, %v39
  %v376 = vmul.f32 %v355, %v40
  %v377 = vmul.f32 %v359, %v41
  %v378 = vmul.f32 %v363, %v42
  %v379 = vmul.f32 %v367, %v43
  %v380 = vmul.f32 %v371, %v44
  %389 = vrot.lane.b32.xlu0 %v373, 124
  %v390 = vpop.permute.xlu0 %389
  %391 = vrot.lane.b32.xlu0 %v374, 124
  %v392 = vpop.permute.xlu0 %391
  %393 = vrot.lane.b32.xlu0 %v375, 124
  %v394 = vpop.permute.xlu0 %393
  %395 = vrot.lane.b32.xlu0 %v376, 124
  %v396 = vpop.permute.xlu0 %395
  %397 = vrot.lane.b32.xlu0 %v377, 124
  %v398 = vpop.permute.xlu0 %397
  %399 = vrot.lane.b32.xlu0 %v378, 124
  %v400 = vpop.permute.xlu0 %399
  %401 = vrot.lane.b32.xlu0 %v379, 124
  %v402 = vpop.permute.xlu0 %401
  %403 = vrot.lane.b32.xlu0 %v380, 124
  %v404 = vpop.permute.xlu0 %403
  %v413 = vadd.f32 %v333, %v390
  %v414 = vadd.f32 %v334, %v392
  %v415 = vadd.f32 %v335, %v394
  %v416 = vadd.f32 %v336, %v396
  %v417 = vadd.f32 %v337, %v398
  %v418 = vadd.f32 %v338, %v400
  %v419 = vadd.f32 %v339, %v402
  %v420 = vadd.f32 %v340, %v404
  %421 = vset.pattern.permute.xlu0 5
  %422 = vperm.xlu0 %421, %v45
  %v423 = vpop.permute.xlu0 %422
  %425 = vset.pattern.permute.xlu0 5
  %426 = vperm.xlu0 %425, %v46
  %v427 = vpop.permute.xlu0 %426
  %429 = vset.pattern.permute.xlu0 5
  %430 = vperm.xlu0 %429, %v47
  %v431 = vpop.permute.xlu0 %430
  %433 = vset.pattern.permute.xlu0 5
  %434 = vperm.xlu0 %433, %v48
  %v435 = vpop.permute.xlu0 %434
  %437 = vset.pattern.permute.xlu0 5
  %438 = vperm.xlu0 %437, %v49
  %v439 = vpop.permute.xlu0 %438
  %441 = vset.pattern.permute.xlu0 5
  %442 = vperm.xlu0 %441, %v50
  %v443 = vpop.permute.xlu0 %442
  %445 = vset.pattern.permute.xlu0 5
  %446 = vperm.xlu0 %445, %v51
  %v447 = vpop.permute.xlu0 %446
  %449 = vset.pattern.permute.xlu0 5
  %450 = vperm.xlu0 %449, %v52
  %v451 = vpop.permute.xlu0 %450
  %v453 = vmul.f32 %v423, %v37
  %v454 = vmul.f32 %v427, %v38
  %v455 = vmul.f32 %v431, %v39
  %v456 = vmul.f32 %v435, %v40
  %v457 = vmul.f32 %v439, %v41
  %v458 = vmul.f32 %v443, %v42
  %v459 = vmul.f32 %v447, %v43
  %v460 = vmul.f32 %v451, %v44
  %469 = vrot.lane.b32.xlu0 %v453, 123
  %v470 = vpop.permute.xlu0 %469
  %471 = vrot.lane.b32.xlu0 %v454, 123
  %v472 = vpop.permute.xlu0 %471
  %473 = vrot.lane.b32.xlu0 %v455, 123
  %v474 = vpop.permute.xlu0 %473
  %475 = vrot.lane.b32.xlu0 %v456, 123
  %v476 = vpop.permute.xlu0 %475
  %477 = vrot.lane.b32.xlu0 %v457, 123
  %v478 = vpop.permute.xlu0 %477
  %479 = vrot.lane.b32.xlu0 %v458, 123
  %v480 = vpop.permute.xlu0 %479
  %481 = vrot.lane.b32.xlu0 %v459, 123
  %v482 = vpop.permute.xlu0 %481
  %483 = vrot.lane.b32.xlu0 %v460, 123
  %v484 = vpop.permute.xlu0 %483
  %v493 = vadd.f32 %v413, %v470
  %v494 = vadd.f32 %v414, %v472
  %v495 = vadd.f32 %v415, %v474
  %v496 = vadd.f32 %v416, %v476
  %v497 = vadd.f32 %v417, %v478
  %v498 = vadd.f32 %v418, %v480
  %v499 = vadd.f32 %v419, %v482
  %v500 = vadd.f32 %v420, %v484
  %501 = vset.pattern.permute.xlu0 6
  %502 = vperm.xlu0 %501, %v45
  %v503 = vpop.permute.xlu0 %502
  %505 = vset.pattern.permute.xlu0 6
  %506 = vperm.xlu0 %505, %v46
  %v507 = vpop.permute.xlu0 %506
  %509 = vset.pattern.permute.xlu0 6
  %510 = vperm.xlu0 %509, %v47
  %v511 = vpop.permute.xlu0 %510
  %513 = vset.pattern.permute.xlu0 6
  %514 = vperm.xlu0 %513, %v48
  %v515 = vpop.permute.xlu0 %514
  %517 = vset.pattern.permute.xlu0 6
  %518 = vperm.xlu0 %517, %v49
  %v519 = vpop.permute.xlu0 %518
  %521 = vset.pattern.permute.xlu0 6
  %522 = vperm.xlu0 %521, %v50
  %v523 = vpop.permute.xlu0 %522
  %525 = vset.pattern.permute.xlu0 6
  %526 = vperm.xlu0 %525, %v51
  %v527 = vpop.permute.xlu0 %526
  %529 = vset.pattern.permute.xlu0 6
  %530 = vperm.xlu0 %529, %v52
  %v531 = vpop.permute.xlu0 %530
  %v533 = vmul.f32 %v503, %v37
  %v534 = vmul.f32 %v507, %v38
  %v535 = vmul.f32 %v511, %v39
  %v536 = vmul.f32 %v515, %v40
  %v537 = vmul.f32 %v519, %v41
  %v538 = vmul.f32 %v523, %v42
  %v539 = vmul.f32 %v527, %v43
  %v540 = vmul.f32 %v531, %v44
  %549 = vrot.lane.b32.xlu0 %v533, 122
  %v550 = vpop.permute.xlu0 %549
  %551 = vrot.lane.b32.xlu0 %v534, 122
  %v552 = vpop.permute.xlu0 %551
  %553 = vrot.lane.b32.xlu0 %v535, 122
  %v554 = vpop.permute.xlu0 %553
  %555 = vrot.lane.b32.xlu0 %v536, 122
  %v556 = vpop.permute.xlu0 %555
  %557 = vrot.lane.b32.xlu0 %v537, 122
  %v558 = vpop.permute.xlu0 %557
  %559 = vrot.lane.b32.xlu0 %v538, 122
  %v560 = vpop.permute.xlu0 %559
  %561 = vrot.lane.b32.xlu0 %v539, 122
  %v562 = vpop.permute.xlu0 %561
  %563 = vrot.lane.b32.xlu0 %v540, 122
  %v564 = vpop.permute.xlu0 %563
  %v573 = vadd.f32 %v493, %v550
  %v574 = vadd.f32 %v494, %v552
  %v575 = vadd.f32 %v495, %v554
  %v576 = vadd.f32 %v496, %v556
  %v577 = vadd.f32 %v497, %v558
  %v578 = vadd.f32 %v498, %v560
  %v579 = vadd.f32 %v499, %v562
  %v580 = vadd.f32 %v500, %v564
  %581 = vset.pattern.permute.xlu0 7
  %582 = vperm.xlu0 %581, %v45
  %v583 = vpop.permute.xlu0 %582
  %585 = vset.pattern.permute.xlu0 7
  %586 = vperm.xlu0 %585, %v46
  %v587 = vpop.permute.xlu0 %586
  %589 = vset.pattern.permute.xlu0 7
  %590 = vperm.xlu0 %589, %v47
  %v591 = vpop.permute.xlu0 %590
  %593 = vset.pattern.permute.xlu0 7
  %594 = vperm.xlu0 %593, %v48
  %v595 = vpop.permute.xlu0 %594
  %597 = vset.pattern.permute.xlu0 7
  %598 = vperm.xlu0 %597, %v49
  %v599 = vpop.permute.xlu0 %598
  %601 = vset.pattern.permute.xlu0 7
  %602 = vperm.xlu0 %601, %v50
  %v603 = vpop.permute.xlu0 %602
  %605 = vset.pattern.permute.xlu0 7
  %606 = vperm.xlu0 %605, %v51
  %v607 = vpop.permute.xlu0 %606
  %609 = vset.pattern.permute.xlu0 7
  %610 = vperm.xlu0 %609, %v52
  %v611 = vpop.permute.xlu0 %610
  %v613 = vmul.f32 %v583, %v37
  %v614 = vmul.f32 %v587, %v38
  %v615 = vmul.f32 %v591, %v39
  %v616 = vmul.f32 %v595, %v40
  %v617 = vmul.f32 %v599, %v41
  %v618 = vmul.f32 %v603, %v42
  %v619 = vmul.f32 %v607, %v43
  %v620 = vmul.f32 %v611, %v44
  %629 = vrot.lane.b32.xlu0 %v613, 121
  %v630 = vpop.permute.xlu0 %629
  %631 = vrot.lane.b32.xlu0 %v614, 121
  %v632 = vpop.permute.xlu0 %631
  %633 = vrot.lane.b32.xlu0 %v615, 121
  %v634 = vpop.permute.xlu0 %633
  %635 = vrot.lane.b32.xlu0 %v616, 121
  %v636 = vpop.permute.xlu0 %635
  %637 = vrot.lane.b32.xlu0 %v617, 121
  %v638 = vpop.permute.xlu0 %637
  %639 = vrot.lane.b32.xlu0 %v618, 121
  %v640 = vpop.permute.xlu0 %639
  %641 = vrot.lane.b32.xlu0 %v619, 121
  %v642 = vpop.permute.xlu0 %641
  %643 = vrot.lane.b32.xlu0 %v620, 121
  %v644 = vpop.permute.xlu0 %643
  %v653 = vadd.f32 %v573, %v630
  %v654 = vadd.f32 %v574, %v632
  %v655 = vadd.f32 %v575, %v634
  %v656 = vadd.f32 %v576, %v636
  %v657 = vadd.f32 %v577, %v638
  %v658 = vadd.f32 %v578, %v640
  %v659 = vadd.f32 %v579, %v642
  %v660 = vadd.f32 %v580, %v644
  %661 = vset.pattern.permute.xlu0 8
  %662 = vperm.xlu0 %661, %v45
  %v663 = vpop.permute.xlu0 %662
  %665 = vset.pattern.permute.xlu0 8
  %666 = vperm.xlu0 %665, %v46
  %v667 = vpop.permute.xlu0 %666
  %669 = vset.pattern.permute.xlu0 8
  %670 = vperm.xlu0 %669, %v47
  %v671 = vpop.permute.xlu0 %670
  %673 = vset.pattern.permute.xlu0 8
  %674 = vperm.xlu0 %673, %v48
  %v675 = vpop.permute.xlu0 %674
  %677 = vset.pattern.permute.xlu0 8
  %678 = vperm.xlu0 %677, %v49
  %v679 = vpop.permute.xlu0 %678
  %681 = vset.pattern.permute.xlu0 8
  %682 = vperm.xlu0 %681, %v50
  %v683 = vpop.permute.xlu0 %682
  %685 = vset.pattern.permute.xlu0 8
  %686 = vperm.xlu0 %685, %v51
  %v687 = vpop.permute.xlu0 %686
  %689 = vset.pattern.permute.xlu0 8
  %690 = vperm.xlu0 %689, %v52
  %v691 = vpop.permute.xlu0 %690
  %v693 = vmul.f32 %v663, %v37
  %v694 = vmul.f32 %v667, %v38
  %v695 = vmul.f32 %v671, %v39
  %v696 = vmul.f32 %v675, %v40
  %v697 = vmul.f32 %v679, %v41
  %v698 = vmul.f32 %v683, %v42
  %v699 = vmul.f32 %v687, %v43
  %v700 = vmul.f32 %v691, %v44
  %709 = vrot.lane.b32.xlu0 %v693, 120
  %v710 = vpop.permute.xlu0 %709
  %711 = vrot.lane.b32.xlu0 %v694, 120
  %v712 = vpop.permute.xlu0 %711
  %713 = vrot.lane.b32.xlu0 %v695, 120
  %v714 = vpop.permute.xlu0 %713
  %715 = vrot.lane.b32.xlu0 %v696, 120
  %v716 = vpop.permute.xlu0 %715
  %717 = vrot.lane.b32.xlu0 %v697, 120
  %v718 = vpop.permute.xlu0 %717
  %719 = vrot.lane.b32.xlu0 %v698, 120
  %v720 = vpop.permute.xlu0 %719
  %721 = vrot.lane.b32.xlu0 %v699, 120
  %v722 = vpop.permute.xlu0 %721
  %723 = vrot.lane.b32.xlu0 %v700, 120
  %v724 = vpop.permute.xlu0 %723
  %v733 = vadd.f32 %v653, %v710
  %v734 = vadd.f32 %v654, %v712
  %v735 = vadd.f32 %v655, %v714
  %v736 = vadd.f32 %v656, %v716
  %v737 = vadd.f32 %v657, %v718
  %v738 = vadd.f32 %v658, %v720
  %v739 = vadd.f32 %v659, %v722
  %v740 = vadd.f32 %v660, %v724
  %741 = vset.pattern.permute.xlu0 9
  %742 = vperm.xlu0 %741, %v45
  %v743 = vpop.permute.xlu0 %742
  %745 = vset.pattern.permute.xlu0 9
  %746 = vperm.xlu0 %745, %v46
  %v747 = vpop.permute.xlu0 %746
  %749 = vset.pattern.permute.xlu0 9
  %750 = vperm.xlu0 %749, %v47
  %v751 = vpop.permute.xlu0 %750
  %753 = vset.pattern.permute.xlu0 9
  %754 = vperm.xlu0 %753, %v48
  %v755 = vpop.permute.xlu0 %754
  %757 = vset.pattern.permute.xlu0 9
  %758 = vperm.xlu0 %757, %v49
  %v759 = vpop.permute.xlu0 %758
  %761 = vset.pattern.permute.xlu0 9
  %762 = vperm.xlu0 %761, %v50
  %v763 = vpop.permute.xlu0 %762
  %765 = vset.pattern.permute.xlu0 9
  %766 = vperm.xlu0 %765, %v51
  %v767 = vpop.permute.xlu0 %766
  %769 = vset.pattern.permute.xlu0 9
  %770 = vperm.xlu0 %769, %v52
  %v771 = vpop.permute.xlu0 %770
  %v773 = vmul.f32 %v743, %v37
  %v774 = vmul.f32 %v747, %v38
  %v775 = vmul.f32 %v751, %v39
  %v776 = vmul.f32 %v755, %v40
  %v777 = vmul.f32 %v759, %v41
  %v778 = vmul.f32 %v763, %v42
  %v779 = vmul.f32 %v767, %v43
  %v780 = vmul.f32 %v771, %v44
  %789 = vrot.lane.b32.xlu0 %v773, 119
  %v790 = vpop.permute.xlu0 %789
  %791 = vrot.lane.b32.xlu0 %v774, 119
  %v792 = vpop.permute.xlu0 %791
  %793 = vrot.lane.b32.xlu0 %v775, 119
  %v794 = vpop.permute.xlu0 %793
  %795 = vrot.lane.b32.xlu0 %v776, 119
  %v796 = vpop.permute.xlu0 %795
  %797 = vrot.lane.b32.xlu0 %v777, 119
  %v798 = vpop.permute.xlu0 %797
  %799 = vrot.lane.b32.xlu0 %v778, 119
  %v800 = vpop.permute.xlu0 %799
  %801 = vrot.lane.b32.xlu0 %v779, 119
  %v802 = vpop.permute.xlu0 %801
  %803 = vrot.lane.b32.xlu0 %v780, 119
  %v804 = vpop.permute.xlu0 %803
  %v813 = vadd.f32 %v733, %v790
  %v814 = vadd.f32 %v734, %v792
  %v815 = vadd.f32 %v735, %v794
  %v816 = vadd.f32 %v736, %v796
  %v817 = vadd.f32 %v737, %v798
  %v818 = vadd.f32 %v738, %v800
  %v819 = vadd.f32 %v739, %v802
  %v820 = vadd.f32 %v740, %v804
  %821 = vset.pattern.permute.xlu0 10
  %822 = vperm.xlu0 %821, %v45
  %v823 = vpop.permute.xlu0 %822
  %825 = vset.pattern.permute.xlu0 10
  %826 = vperm.xlu0 %825, %v46
  %v827 = vpop.permute.xlu0 %826
  %829 = vset.pattern.permute.xlu0 10
  %830 = vperm.xlu0 %829, %v47
  %v831 = vpop.permute.xlu0 %830
  %833 = vset.pattern.permute.xlu0 10
  %834 = vperm.xlu0 %833, %v48
  %v835 = vpop.permute.xlu0 %834
  %837 = vset.pattern.permute.xlu0 10
  %838 = vperm.xlu0 %837, %v49
  %v839 = vpop.permute.xlu0 %838
  %841 = vset.pattern.permute.xlu0 10
  %842 = vperm.xlu0 %841, %v50
  %v843 = vpop.permute.xlu0 %842
  %845 = vset.pattern.permute.xlu0 10
  %846 = vperm.xlu0 %845, %v51
  %v847 = vpop.permute.xlu0 %846
  %849 = vset.pattern.permute.xlu0 10
  %850 = vperm.xlu0 %849, %v52
  %v851 = vpop.permute.xlu0 %850
  %v853 = vmul.f32 %v823, %v37
  %v854 = vmul.f32 %v827, %v38
  %v855 = vmul.f32 %v831, %v39
  %v856 = vmul.f32 %v835, %v40
  %v857 = vmul.f32 %v839, %v41
  %v858 = vmul.f32 %v843, %v42
  %v859 = vmul.f32 %v847, %v43
  %v860 = vmul.f32 %v851, %v44
  %869 = vrot.lane.b32.xlu0 %v853, 118
  %v870 = vpop.permute.xlu0 %869
  %871 = vrot.lane.b32.xlu0 %v854, 118
  %v872 = vpop.permute.xlu0 %871
  %873 = vrot.lane.b32.xlu0 %v855, 118
  %v874 = vpop.permute.xlu0 %873
  %875 = vrot.lane.b32.xlu0 %v856, 118
  %v876 = vpop.permute.xlu0 %875
  %877 = vrot.lane.b32.xlu0 %v857, 118
  %v878 = vpop.permute.xlu0 %877
  %879 = vrot.lane.b32.xlu0 %v858, 118
  %v880 = vpop.permute.xlu0 %879
  %881 = vrot.lane.b32.xlu0 %v859, 118
  %v882 = vpop.permute.xlu0 %881
  %883 = vrot.lane.b32.xlu0 %v860, 118
  %v884 = vpop.permute.xlu0 %883
  %v893 = vadd.f32 %v813, %v870
  %v894 = vadd.f32 %v814, %v872
  %v895 = vadd.f32 %v815, %v874
  %v896 = vadd.f32 %v816, %v876
  %v897 = vadd.f32 %v817, %v878
  %v898 = vadd.f32 %v818, %v880
  %v899 = vadd.f32 %v819, %v882
  %v900 = vadd.f32 %v820, %v884
  %901 = vset.pattern.permute.xlu0 11
  %902 = vperm.xlu0 %901, %v45
  %v903 = vpop.permute.xlu0 %902
  %905 = vset.pattern.permute.xlu0 11
  %906 = vperm.xlu0 %905, %v46
  %v907 = vpop.permute.xlu0 %906
  %909 = vset.pattern.permute.xlu0 11
  %910 = vperm.xlu0 %909, %v47
  %v911 = vpop.permute.xlu0 %910
  %913 = vset.pattern.permute.xlu0 11
  %914 = vperm.xlu0 %913, %v48
  %v915 = vpop.permute.xlu0 %914
  %917 = vset.pattern.permute.xlu0 11
  %918 = vperm.xlu0 %917, %v49
  %v919 = vpop.permute.xlu0 %918
  %921 = vset.pattern.permute.xlu0 11
  %922 = vperm.xlu0 %921, %v50
  %v923 = vpop.permute.xlu0 %922
  %925 = vset.pattern.permute.xlu0 11
  %926 = vperm.xlu0 %925, %v51
  %v927 = vpop.permute.xlu0 %926
  %929 = vset.pattern.permute.xlu0 11
  %930 = vperm.xlu0 %929, %v52
  %v931 = vpop.permute.xlu0 %930
  %v933 = vmul.f32 %v903, %v37
  %v934 = vmul.f32 %v907, %v38
  %v935 = vmul.f32 %v911, %v39
  %v936 = vmul.f32 %v915, %v40
  %v937 = vmul.f32 %v919, %v41
  %v938 = vmul.f32 %v923, %v42
  %v939 = vmul.f32 %v927, %v43
  %v940 = vmul.f32 %v931, %v44
  %949 = vrot.lane.b32.xlu0 %v933, 117
  %v950 = vpop.permute.xlu0 %949
  %951 = vrot.lane.b32.xlu0 %v934, 117
  %v952 = vpop.permute.xlu0 %951
  %953 = vrot.lane.b32.xlu0 %v935, 117
  %v954 = vpop.permute.xlu0 %953
  %955 = vrot.lane.b32.xlu0 %v936, 117
  %v956 = vpop.permute.xlu0 %955
  %957 = vrot.lane.b32.xlu0 %v937, 117
  %v958 = vpop.permute.xlu0 %957
  %959 = vrot.lane.b32.xlu0 %v938, 117
  %v960 = vpop.permute.xlu0 %959
  %961 = vrot.lane.b32.xlu0 %v939, 117
  %v962 = vpop.permute.xlu0 %961
  %963 = vrot.lane.b32.xlu0 %v940, 117
  %v964 = vpop.permute.xlu0 %963
  %v973 = vadd.f32 %v893, %v950
  %v974 = vadd.f32 %v894, %v952
  %v975 = vadd.f32 %v895, %v954
  %v976 = vadd.f32 %v896, %v956
  %v977 = vadd.f32 %v897, %v958
  %v978 = vadd.f32 %v898, %v960
  %v979 = vadd.f32 %v899, %v962
  %v980 = vadd.f32 %v900, %v964
  %981 = vset.pattern.permute.xlu0 12
  %982 = vperm.xlu0 %981, %v45
  %v983 = vpop.permute.xlu0 %982
  %985 = vset.pattern.permute.xlu0 12
  %986 = vperm.xlu0 %985, %v46
  %v987 = vpop.permute.xlu0 %986
  %989 = vset.pattern.permute.xlu0 12
  %990 = vperm.xlu0 %989, %v47
  %v991 = vpop.permute.xlu0 %990
  %993 = vset.pattern.permute.xlu0 12
  %994 = vperm.xlu0 %993, %v48
  %v995 = vpop.permute.xlu0 %994
  %997 = vset.pattern.permute.xlu0 12
  %998 = vperm.xlu0 %997, %v49
  %v999 = vpop.permute.xlu0 %998
  %1001 = vset.pattern.permute.xlu0 12
  %1002 = vperm.xlu0 %1001, %v50
  %v1003 = vpop.permute.xlu0 %1002
  %1005 = vset.pattern.permute.xlu0 12
  %1006 = vperm.xlu0 %1005, %v51
  %v1007 = vpop.permute.xlu0 %1006
  %1009 = vset.pattern.permute.xlu0 12
  %1010 = vperm.xlu0 %1009, %v52
  %v1011 = vpop.permute.xlu0 %1010
  %v1013 = vmul.f32 %v983, %v37
  %v1014 = vmul.f32 %v987, %v38
  %v1015 = vmul.f32 %v991, %v39
  %v1016 = vmul.f32 %v995, %v40
  %v1017 = vmul.f32 %v999, %v41
  %v1018 = vmul.f32 %v1003, %v42
  %v1019 = vmul.f32 %v1007, %v43
  %v1020 = vmul.f32 %v1011, %v44
  %1029 = vrot.lane.b32.xlu0 %v1013, 116
  %v1030 = vpop.permute.xlu0 %1029
  %1031 = vrot.lane.b32.xlu0 %v1014, 116
  %v1032 = vpop.permute.xlu0 %1031
  %1033 = vrot.lane.b32.xlu0 %v1015, 116
  %v1034 = vpop.permute.xlu0 %1033
  %1035 = vrot.lane.b32.xlu0 %v1016, 116
  %v1036 = vpop.permute.xlu0 %1035
  %1037 = vrot.lane.b32.xlu0 %v1017, 116
  %v1038 = vpop.permute.xlu0 %1037
  %1039 = vrot.lane.b32.xlu0 %v1018, 116
  %v1040 = vpop.permute.xlu0 %1039
  %1041 = vrot.lane.b32.xlu0 %v1019, 116
  %v1042 = vpop.permute.xlu0 %1041
  %1043 = vrot.lane.b32.xlu0 %v1020, 116
  %v1044 = vpop.permute.xlu0 %1043
  %v1053 = vadd.f32 %v973, %v1030
  %v1054 = vadd.f32 %v974, %v1032
  %v1055 = vadd.f32 %v975, %v1034
  %v1056 = vadd.f32 %v976, %v1036
  %v1057 = vadd.f32 %v977, %v1038
  %v1058 = vadd.f32 %v978, %v1040
  %v1059 = vadd.f32 %v979, %v1042
  %v1060 = vadd.f32 %v980, %v1044
  %1061 = vset.pattern.permute.xlu0 13
  %1062 = vperm.xlu0 %1061, %v45
  %v1063 = vpop.permute.xlu0 %1062
  %1065 = vset.pattern.permute.xlu0 13
  %1066 = vperm.xlu0 %1065, %v46
  %v1067 = vpop.permute.xlu0 %1066
  %1069 = vset.pattern.permute.xlu0 13
  %1070 = vperm.xlu0 %1069, %v47
  %v1071 = vpop.permute.xlu0 %1070
  %1073 = vset.pattern.permute.xlu0 13
  %1074 = vperm.xlu0 %1073, %v48
  %v1075 = vpop.permute.xlu0 %1074
  %1077 = vset.pattern.permute.xlu0 13
  %1078 = vperm.xlu0 %1077, %v49
  %v1079 = vpop.permute.xlu0 %1078
  %1081 = vset.pattern.permute.xlu0 13
  %1082 = vperm.xlu0 %1081, %v50
  %v1083 = vpop.permute.xlu0 %1082
  %1085 = vset.pattern.permute.xlu0 13
  %1086 = vperm.xlu0 %1085, %v51
  %v1087 = vpop.permute.xlu0 %1086
  %1089 = vset.pattern.permute.xlu0 13
  %1090 = vperm.xlu0 %1089, %v52
  %v1091 = vpop.permute.xlu0 %1090
  %v1093 = vmul.f32 %v1063, %v37
  %v1094 = vmul.f32 %v1067, %v38
  %v1095 = vmul.f32 %v1071, %v39
  %v1096 = vmul.f32 %v1075, %v40
  %v1097 = vmul.f32 %v1079, %v41
  %v1098 = vmul.f32 %v1083, %v42
  %v1099 = vmul.f32 %v1087, %v43
  %v1100 = vmul.f32 %v1091, %v44
  %1109 = vrot.lane.b32.xlu0 %v1093, 115
  %v1110 = vpop.permute.xlu0 %1109
  %1111 = vrot.lane.b32.xlu0 %v1094, 115
  %v1112 = vpop.permute.xlu0 %1111
  %1113 = vrot.lane.b32.xlu0 %v1095, 115
  %v1114 = vpop.permute.xlu0 %1113
  %1115 = vrot.lane.b32.xlu0 %v1096, 115
  %v1116 = vpop.permute.xlu0 %1115
  %1117 = vrot.lane.b32.xlu0 %v1097, 115
  %v1118 = vpop.permute.xlu0 %1117
  %1119 = vrot.lane.b32.xlu0 %v1098, 115
  %v1120 = vpop.permute.xlu0 %1119
  %1121 = vrot.lane.b32.xlu0 %v1099, 115
  %v1122 = vpop.permute.xlu0 %1121
  %1123 = vrot.lane.b32.xlu0 %v1100, 115
  %v1124 = vpop.permute.xlu0 %1123
  %v1133 = vadd.f32 %v1053, %v1110
  %v1134 = vadd.f32 %v1054, %v1112
  %v1135 = vadd.f32 %v1055, %v1114
  %v1136 = vadd.f32 %v1056, %v1116
  %v1137 = vadd.f32 %v1057, %v1118
  %v1138 = vadd.f32 %v1058, %v1120
  %v1139 = vadd.f32 %v1059, %v1122
  %v1140 = vadd.f32 %v1060, %v1124
  %1141 = vset.pattern.permute.xlu0 14
  %1142 = vperm.xlu0 %1141, %v45
  %v1143 = vpop.permute.xlu0 %1142
  %1145 = vset.pattern.permute.xlu0 14
  %1146 = vperm.xlu0 %1145, %v46
  %v1147 = vpop.permute.xlu0 %1146
  %1149 = vset.pattern.permute.xlu0 14
  %1150 = vperm.xlu0 %1149, %v47
  %v1151 = vpop.permute.xlu0 %1150
  %1153 = vset.pattern.permute.xlu0 14
  %1154 = vperm.xlu0 %1153, %v48
  %v1155 = vpop.permute.xlu0 %1154
  %1157 = vset.pattern.permute.xlu0 14
  %1158 = vperm.xlu0 %1157, %v49
  %v1159 = vpop.permute.xlu0 %1158
  %1161 = vset.pattern.permute.xlu0 14
  %1162 = vperm.xlu0 %1161, %v50
  %v1163 = vpop.permute.xlu0 %1162
  %1165 = vset.pattern.permute.xlu0 14
  %1166 = vperm.xlu0 %1165, %v51
  %v1167 = vpop.permute.xlu0 %1166
  %1169 = vset.pattern.permute.xlu0 14
  %1170 = vperm.xlu0 %1169, %v52
  %v1171 = vpop.permute.xlu0 %1170
  %v1173 = vmul.f32 %v1143, %v37
  %v1174 = vmul.f32 %v1147, %v38
  %v1175 = vmul.f32 %v1151, %v39
  %v1176 = vmul.f32 %v1155, %v40
  %v1177 = vmul.f32 %v1159, %v41
  %v1178 = vmul.f32 %v1163, %v42
  %v1179 = vmul.f32 %v1167, %v43
  %v1180 = vmul.f32 %v1171, %v44
  %1189 = vrot.lane.b32.xlu0 %v1173, 114
  %v1190 = vpop.permute.xlu0 %1189
  %1191 = vrot.lane.b32.xlu0 %v1174, 114
  %v1192 = vpop.permute.xlu0 %1191
  %1193 = vrot.lane.b32.xlu0 %v1175, 114
  %v1194 = vpop.permute.xlu0 %1193
  %1195 = vrot.lane.b32.xlu0 %v1176, 114
  %v1196 = vpop.permute.xlu0 %1195
  %1197 = vrot.lane.b32.xlu0 %v1177, 114
  %v1198 = vpop.permute.xlu0 %1197
  %1199 = vrot.lane.b32.xlu0 %v1178, 114
  %v1200 = vpop.permute.xlu0 %1199
  %1201 = vrot.lane.b32.xlu0 %v1179, 114
  %v1202 = vpop.permute.xlu0 %1201
  %1203 = vrot.lane.b32.xlu0 %v1180, 114
  %v1204 = vpop.permute.xlu0 %1203
  %v1213 = vadd.f32 %v1133, %v1190
  %v1214 = vadd.f32 %v1134, %v1192
  %v1215 = vadd.f32 %v1135, %v1194
  %v1216 = vadd.f32 %v1136, %v1196
  %v1217 = vadd.f32 %v1137, %v1198
  %v1218 = vadd.f32 %v1138, %v1200
  %v1219 = vadd.f32 %v1139, %v1202
  %v1220 = vadd.f32 %v1140, %v1204
  %1221 = vset.pattern.permute.xlu0 15
  %1222 = vperm.xlu0 %1221, %v45
  %v1223 = vpop.permute.xlu0 %1222
  %1225 = vset.pattern.permute.xlu0 15
  %1226 = vperm.xlu0 %1225, %v46
  %v1227 = vpop.permute.xlu0 %1226
  %1229 = vset.pattern.permute.xlu0 15
  %1230 = vperm.xlu0 %1229, %v47
  %v1231 = vpop.permute.xlu0 %1230
  %1233 = vset.pattern.permute.xlu0 15
  %1234 = vperm.xlu0 %1233, %v48
  %v1235 = vpop.permute.xlu0 %1234
  %1237 = vset.pattern.permute.xlu0 15
  %1238 = vperm.xlu0 %1237, %v49
  %v1239 = vpop.permute.xlu0 %1238
  %1241 = vset.pattern.permute.xlu0 15
  %1242 = vperm.xlu0 %1241, %v50
  %v1243 = vpop.permute.xlu0 %1242
  %1245 = vset.pattern.permute.xlu0 15
  %1246 = vperm.xlu0 %1245, %v51
  %v1247 = vpop.permute.xlu0 %1246
  %1249 = vset.pattern.permute.xlu0 15
  %1250 = vperm.xlu0 %1249, %v52
  %v1251 = vpop.permute.xlu0 %1250
  %v1253 = vmul.f32 %v1223, %v37
  %v1254 = vmul.f32 %v1227, %v38
  %v1255 = vmul.f32 %v1231, %v39
  %v1256 = vmul.f32 %v1235, %v40
  %v1257 = vmul.f32 %v1239, %v41
  %v1258 = vmul.f32 %v1243, %v42
  %v1259 = vmul.f32 %v1247, %v43
  %v1260 = vmul.f32 %v1251, %v44
  %1269 = vrot.lane.b32.xlu0 %v1253, 113
  %v1270 = vpop.permute.xlu0 %1269
  %1271 = vrot.lane.b32.xlu0 %v1254, 113
  %v1272 = vpop.permute.xlu0 %1271
  %1273 = vrot.lane.b32.xlu0 %v1255, 113
  %v1274 = vpop.permute.xlu0 %1273
  %1275 = vrot.lane.b32.xlu0 %v1256, 113
  %v1276 = vpop.permute.xlu0 %1275
  %1277 = vrot.lane.b32.xlu0 %v1257, 113
  %v1278 = vpop.permute.xlu0 %1277
  %1279 = vrot.lane.b32.xlu0 %v1258, 113
  %v1280 = vpop.permute.xlu0 %1279
  %1281 = vrot.lane.b32.xlu0 %v1259, 113
  %v1282 = vpop.permute.xlu0 %1281
  %1283 = vrot.lane.b32.xlu0 %v1260, 113
  %v1284 = vpop.permute.xlu0 %1283
  %v1293 = vadd.f32 %v1213, %v1270
  %v1294 = vadd.f32 %v1214, %v1272
  %v1295 = vadd.f32 %v1215, %v1274
  %v1296 = vadd.f32 %v1216, %v1276
  %v1297 = vadd.f32 %v1217, %v1278
  %v1298 = vadd.f32 %v1218, %v1280
  %v1299 = vadd.f32 %v1219, %v1282
  %v1300 = vadd.f32 %v1220, %v1284
  %1301 = vset.pattern.permute.xlu0 16
  %1302 = vperm.xlu0 %1301, %v45
  %v1303 = vpop.permute.xlu0 %1302
  %1305 = vset.pattern.permute.xlu0 16
  %1306 = vperm.xlu0 %1305, %v46
  %v1307 = vpop.permute.xlu0 %1306
  %1309 = vset.pattern.permute.xlu0 16
  %1310 = vperm.xlu0 %1309, %v47
  %v1311 = vpop.permute.xlu0 %1310
  %1313 = vset.pattern.permute.xlu0 16
  %1314 = vperm.xlu0 %1313, %v48
  %v1315 = vpop.permute.xlu0 %1314
  %1317 = vset.pattern.permute.xlu0 16
  %1318 = vperm.xlu0 %1317, %v49
  %v1319 = vpop.permute.xlu0 %1318
  %1321 = vset.pattern.permute.xlu0 16
  %1322 = vperm.xlu0 %1321, %v50
  %v1323 = vpop.permute.xlu0 %1322
  %1325 = vset.pattern.permute.xlu0 16
  %1326 = vperm.xlu0 %1325, %v51
  %v1327 = vpop.permute.xlu0 %1326
  %1329 = vset.pattern.permute.xlu0 16
  %1330 = vperm.xlu0 %1329, %v52
  %v1331 = vpop.permute.xlu0 %1330
  %v1333 = vmul.f32 %v1303, %v37
  %v1334 = vmul.f32 %v1307, %v38
  %v1335 = vmul.f32 %v1311, %v39
  %v1336 = vmul.f32 %v1315, %v40
  %v1337 = vmul.f32 %v1319, %v41
  %v1338 = vmul.f32 %v1323, %v42
  %v1339 = vmul.f32 %v1327, %v43
  %v1340 = vmul.f32 %v1331, %v44
  %1349 = vrot.lane.b32.xlu0 %v1333, 112
  %v1350 = vpop.permute.xlu0 %1349
  %1351 = vrot.lane.b32.xlu0 %v1334, 112
  %v1352 = vpop.permute.xlu0 %1351
  %1353 = vrot.lane.b32.xlu0 %v1335, 112
  %v1354 = vpop.permute.xlu0 %1353
  %1355 = vrot.lane.b32.xlu0 %v1336, 112
  %v1356 = vpop.permute.xlu0 %1355
  %1357 = vrot.lane.b32.xlu0 %v1337, 112
  %v1358 = vpop.permute.xlu0 %1357
  %1359 = vrot.lane.b32.xlu0 %v1338, 112
  %v1360 = vpop.permute.xlu0 %1359
  %1361 = vrot.lane.b32.xlu0 %v1339, 112
  %v1362 = vpop.permute.xlu0 %1361
  %1363 = vrot.lane.b32.xlu0 %v1340, 112
  %v1364 = vpop.permute.xlu0 %1363
  %v1373 = vadd.f32 %v1293, %v1350
  %v1374 = vadd.f32 %v1294, %v1352
  %v1375 = vadd.f32 %v1295, %v1354
  %v1376 = vadd.f32 %v1296, %v1356
  %v1377 = vadd.f32 %v1297, %v1358
  %v1378 = vadd.f32 %v1298, %v1360
  %v1379 = vadd.f32 %v1299, %v1362
  %v1380 = vadd.f32 %v1300, %v1364
  %1381 = vset.pattern.permute.xlu0 17
  %1382 = vperm.xlu0 %1381, %v45
  %v1383 = vpop.permute.xlu0 %1382
  %1385 = vset.pattern.permute.xlu0 17
  %1386 = vperm.xlu0 %1385, %v46
  %v1387 = vpop.permute.xlu0 %1386
  %1389 = vset.pattern.permute.xlu0 17
  %1390 = vperm.xlu0 %1389, %v47
  %v1391 = vpop.permute.xlu0 %1390
  %1393 = vset.pattern.permute.xlu0 17
  %1394 = vperm.xlu0 %1393, %v48
  %v1395 = vpop.permute.xlu0 %1394
  %1397 = vset.pattern.permute.xlu0 17
  %1398 = vperm.xlu0 %1397, %v49
  %v1399 = vpop.permute.xlu0 %1398
  %1401 = vset.pattern.permute.xlu0 17
  %1402 = vperm.xlu0 %1401, %v50
  %v1403 = vpop.permute.xlu0 %1402
  %1405 = vset.pattern.permute.xlu0 17
  %1406 = vperm.xlu0 %1405, %v51
  %v1407 = vpop.permute.xlu0 %1406
  %1409 = vset.pattern.permute.xlu0 17
  %1410 = vperm.xlu0 %1409, %v52
  %v1411 = vpop.permute.xlu0 %1410
  %v1413 = vmul.f32 %v1383, %v37
  %v1414 = vmul.f32 %v1387, %v38
  %v1415 = vmul.f32 %v1391, %v39
  %v1416 = vmul.f32 %v1395, %v40
  %v1417 = vmul.f32 %v1399, %v41
  %v1418 = vmul.f32 %v1403, %v42
  %v1419 = vmul.f32 %v1407, %v43
  %v1420 = vmul.f32 %v1411, %v44
  %1429 = vrot.lane.b32.xlu0 %v1413, 111
  %v1430 = vpop.permute.xlu0 %1429
  %1431 = vrot.lane.b32.xlu0 %v1414, 111
  %v1432 = vpop.permute.xlu0 %1431
  %1433 = vrot.lane.b32.xlu0 %v1415, 111
  %v1434 = vpop.permute.xlu0 %1433
  %1435 = vrot.lane.b32.xlu0 %v1416, 111
  %v1436 = vpop.permute.xlu0 %1435
  %1437 = vrot.lane.b32.xlu0 %v1417, 111
  %v1438 = vpop.permute.xlu0 %1437
  %1439 = vrot.lane.b32.xlu0 %v1418, 111
  %v1440 = vpop.permute.xlu0 %1439
  %1441 = vrot.lane.b32.xlu0 %v1419, 111
  %v1442 = vpop.permute.xlu0 %1441
  %1443 = vrot.lane.b32.xlu0 %v1420, 111
  %v1444 = vpop.permute.xlu0 %1443
  %v1453 = vadd.f32 %v1373, %v1430
  %v1454 = vadd.f32 %v1374, %v1432
  %v1455 = vadd.f32 %v1375, %v1434
  %v1456 = vadd.f32 %v1376, %v1436
  %v1457 = vadd.f32 %v1377, %v1438
  %v1458 = vadd.f32 %v1378, %v1440
  %v1459 = vadd.f32 %v1379, %v1442
  %v1460 = vadd.f32 %v1380, %v1444
  %1461 = vset.pattern.permute.xlu0 18
  %1462 = vperm.xlu0 %1461, %v45
  %v1463 = vpop.permute.xlu0 %1462
  %1465 = vset.pattern.permute.xlu0 18
  %1466 = vperm.xlu0 %1465, %v46
  %v1467 = vpop.permute.xlu0 %1466
  %1469 = vset.pattern.permute.xlu0 18
  %1470 = vperm.xlu0 %1469, %v47
  %v1471 = vpop.permute.xlu0 %1470
  %1473 = vset.pattern.permute.xlu0 18
  %1474 = vperm.xlu0 %1473, %v48
  %v1475 = vpop.permute.xlu0 %1474
  %1477 = vset.pattern.permute.xlu0 18
  %1478 = vperm.xlu0 %1477, %v49
  %v1479 = vpop.permute.xlu0 %1478
  %1481 = vset.pattern.permute.xlu0 18
  %1482 = vperm.xlu0 %1481, %v50
  %v1483 = vpop.permute.xlu0 %1482
  %1485 = vset.pattern.permute.xlu0 18
  %1486 = vperm.xlu0 %1485, %v51
  %v1487 = vpop.permute.xlu0 %1486
  %1489 = vset.pattern.permute.xlu0 18
  %1490 = vperm.xlu0 %1489, %v52
  %v1491 = vpop.permute.xlu0 %1490
  %v1493 = vmul.f32 %v1463, %v37
  %v1494 = vmul.f32 %v1467, %v38
  %v1495 = vmul.f32 %v1471, %v39
  %v1496 = vmul.f32 %v1475, %v40
  %v1497 = vmul.f32 %v1479, %v41
  %v1498 = vmul.f32 %v1483, %v42
  %v1499 = vmul.f32 %v1487, %v43
  %v1500 = vmul.f32 %v1491, %v44
  %1509 = vrot.lane.b32.xlu0 %v1493, 110
  %v1510 = vpop.permute.xlu0 %1509
  %1511 = vrot.lane.b32.xlu0 %v1494, 110
  %v1512 = vpop.permute.xlu0 %1511
  %1513 = vrot.lane.b32.xlu0 %v1495, 110
  %v1514 = vpop.permute.xlu0 %1513
  %1515 = vrot.lane.b32.xlu0 %v1496, 110
  %v1516 = vpop.permute.xlu0 %1515
  %1517 = vrot.lane.b32.xlu0 %v1497, 110
  %v1518 = vpop.permute.xlu0 %1517
  %1519 = vrot.lane.b32.xlu0 %v1498, 110
  %v1520 = vpop.permute.xlu0 %1519
  %1521 = vrot.lane.b32.xlu0 %v1499, 110
  %v1522 = vpop.permute.xlu0 %1521
  %1523 = vrot.lane.b32.xlu0 %v1500, 110
  %v1524 = vpop.permute.xlu0 %1523
  %v1533 = vadd.f32 %v1453, %v1510
  %v1534 = vadd.f32 %v1454, %v1512
  %v1535 = vadd.f32 %v1455, %v1514
  %v1536 = vadd.f32 %v1456, %v1516
  %v1537 = vadd.f32 %v1457, %v1518
  %v1538 = vadd.f32 %v1458, %v1520
  %v1539 = vadd.f32 %v1459, %v1522
  %v1540 = vadd.f32 %v1460, %v1524
  %1541 = vset.pattern.permute.xlu0 19
  %1542 = vperm.xlu0 %1541, %v45
  %v1543 = vpop.permute.xlu0 %1542
  %1545 = vset.pattern.permute.xlu0 19
  %1546 = vperm.xlu0 %1545, %v46
  %v1547 = vpop.permute.xlu0 %1546
  %1549 = vset.pattern.permute.xlu0 19
  %1550 = vperm.xlu0 %1549, %v47
  %v1551 = vpop.permute.xlu0 %1550
  %1553 = vset.pattern.permute.xlu0 19
  %1554 = vperm.xlu0 %1553, %v48
  %v1555 = vpop.permute.xlu0 %1554
  %1557 = vset.pattern.permute.xlu0 19
  %1558 = vperm.xlu0 %1557, %v49
  %v1559 = vpop.permute.xlu0 %1558
  %1561 = vset.pattern.permute.xlu0 19
  %1562 = vperm.xlu0 %1561, %v50
  %v1563 = vpop.permute.xlu0 %1562
  %1565 = vset.pattern.permute.xlu0 19
  %1566 = vperm.xlu0 %1565, %v51
  %v1567 = vpop.permute.xlu0 %1566
  %1569 = vset.pattern.permute.xlu0 19
  %1570 = vperm.xlu0 %1569, %v52
  %v1571 = vpop.permute.xlu0 %1570
  %v1573 = vmul.f32 %v1543, %v37
  %v1574 = vmul.f32 %v1547, %v38
  %v1575 = vmul.f32 %v1551, %v39
  %v1576 = vmul.f32 %v1555, %v40
  %v1577 = vmul.f32 %v1559, %v41
  %v1578 = vmul.f32 %v1563, %v42
  %v1579 = vmul.f32 %v1567, %v43
  %v1580 = vmul.f32 %v1571, %v44
  %1589 = vrot.lane.b32.xlu0 %v1573, 109
  %v1590 = vpop.permute.xlu0 %1589
  %1591 = vrot.lane.b32.xlu0 %v1574, 109
  %v1592 = vpop.permute.xlu0 %1591
  %1593 = vrot.lane.b32.xlu0 %v1575, 109
  %v1594 = vpop.permute.xlu0 %1593
  %1595 = vrot.lane.b32.xlu0 %v1576, 109
  %v1596 = vpop.permute.xlu0 %1595
  %1597 = vrot.lane.b32.xlu0 %v1577, 109
  %v1598 = vpop.permute.xlu0 %1597
  %1599 = vrot.lane.b32.xlu0 %v1578, 109
  %v1600 = vpop.permute.xlu0 %1599
  %1601 = vrot.lane.b32.xlu0 %v1579, 109
  %v1602 = vpop.permute.xlu0 %1601
  %1603 = vrot.lane.b32.xlu0 %v1580, 109
  %v1604 = vpop.permute.xlu0 %1603
  %v1613 = vadd.f32 %v1533, %v1590
  %v1614 = vadd.f32 %v1534, %v1592
  %v1615 = vadd.f32 %v1535, %v1594
  %v1616 = vadd.f32 %v1536, %v1596
  %v1617 = vadd.f32 %v1537, %v1598
  %v1618 = vadd.f32 %v1538, %v1600
  %v1619 = vadd.f32 %v1539, %v1602
  %v1620 = vadd.f32 %v1540, %v1604
  %v1621 = vld [vmem:[%s2] sm:$0xff]
  %v1622 = vld [vmem:[%s2 + $0x8] sm:$0xff]
  %v1623 = vld [vmem:[%s2 + $0x10] sm:$0xff]
  %v1624 = vld [vmem:[%s2 + $0x18] sm:$0xff]
  %v1625 = vld [vmem:[%s3] sm:$0xff]
  %v1626 = vld [vmem:[%s3 + $0x8] sm:$0xff]
  %v1627 = vld [vmem:[%s3 + $0x10] sm:$0xff]
  %v1628 = vld [vmem:[%s3 + $0x18] sm:$0xff]
  %1630 = vset.pattern.permute.xlu0 0
  %1631 = vperm.xlu0 %1630, %v1625
  %v1632 = vpop.permute.xlu0 %1631
  %1635 = vset.pattern.permute.xlu0 0
  %1636 = vperm.xlu0 %1635, %v1626
  %v1637 = vpop.permute.xlu0 %1636
  %1640 = vset.pattern.permute.xlu0 0
  %1641 = vperm.xlu0 %1640, %v1627
  %v1642 = vpop.permute.xlu0 %1641
  %1645 = vset.pattern.permute.xlu0 0
  %1646 = vperm.xlu0 %1645, %v1628
  %v1647 = vpop.permute.xlu0 %1646
  %vm1649 = vcmask 523264
  %v1651 = vsel %vm1649, %v1621, 0
  %v1654 = vsel %vm1649, %v1622, 0
  %v1657 = vsel %vm1649, %v1623, 0
  %v1660 = vsel %vm1649, %v1624, 0
  %1662 = vmatprep.subr.mxu0 0.0
  %1663 = vmatpush1.msra.mxu0 %v1613
  %1664 = vmatprep.subr.mxu0 0.0
  %1665 = vmatpush1.msra.mxu0 %v1614
  %1666 = vmatprep.subr.mxu0 0.0
  %1667 = vmatpush1.msra.mxu0 %v1615
  %1668 = vmatprep.subr.mxu0 0.0
  %1669 = vmatpush1.msra.mxu0 %v1616
  %1670 = vmatprep.subr.mxu0 0.0
  %1671 = vmatpush1.msra.mxu0 %v1617
  %1672 = vmatprep.subr.mxu0 0.0
  %1673 = vmatpush1.msra.mxu0 %v1618
  %1674 = vmatprep.subr.mxu0 0.0
  %1675 = vmatpush1.msra.mxu0 %v1619
  %1676 = vmatprep.subr.mxu0 0.0
  %1677 = vmatpush1.msra.mxu0 %v1620
  %1678 = vmatprep.subr.mxu0 0.0
  %1679 = vmatpush1.msra.mxu0 0.0
  %1680 = vmatprep.subr.mxu0 0.0
  %1681 = vmatpush1.msra.mxu0 0.0
  %1682 = vmatprep.subr.mxu0 0.0
  %1683 = vmatpush1.msra.mxu0 0.0
  %1684 = vmatprep.subr.mxu0 0.0
  %1685 = vmatpush1.msra.mxu0 0.0
  %1686 = vmatprep.subr.mxu0 0.0
  %1687 = vmatpush1.msra.mxu0 0.0
  %1688 = vmatprep.subr.mxu0 0.0
  %1689 = vmatpush1.msra.mxu0 0.0
  %1690 = vmatprep.subr.mxu0 0.0
  %1691 = vmatpush1.msra.mxu0 0.0
  %1692 = vmatprep.subr.mxu0 0.0
  %1693 = vmatpush1.msra.mxu0 0.0
  %1694 = vmatprep.subr.mxu0 0.0
  %1695 = vmatpush1.msra.mxu0 0.0
  %1696 = vmatprep.subr.mxu0 0.0
  %1697 = vmatpush1.msra.mxu0 0.0
  %1698 = vmatprep.subr.mxu0 0.0
  %1699 = vmatpush1.msra.mxu0 0.0
  %1700 = vmatprep.subr.mxu0 0.0
  %1701 = vmatpush1.msra.mxu0 0.0
  %1702 = vmatprep.subr.mxu0 0.0
  %1703 = vmatpush1.msra.mxu0 0.0
  %1704 = vmatprep.subr.mxu0 0.0
  %1705 = vmatpush1.msra.mxu0 0.0
  %1706 = vmatprep.subr.mxu0 0.0
  %1707 = vmatpush1.msra.mxu0 0.0
  %1708 = vmatprep.subr.mxu0 0.0
  %1709 = vmatpush1.msra.mxu0 0.0
  %1710 = vmatprep.subr.mxu0 0.0
  %1711 = vmatpush1.msra.mxu0 0.0
  %1712 = vmatprep.subr.mxu0 0.0
  %1713 = vmatpush1.msra.mxu0 0.0
  %1714 = vmatprep.subr.mxu0 0.0
  %1715 = vmatpush1.msra.mxu0 0.0
  %1716 = vmatprep.subr.mxu0 0.0
  %1717 = vmatpush1.msra.mxu0 0.0
  %1718 = vmatprep.subr.mxu0 0.0
  %1719 = vmatpush1.msra.mxu0 0.0
  %1720 = vmatprep.subr.mxu0 0.0
  %1721 = vmatpush1.msra.mxu0 0.0
  %1722 = vmatprep.subr.mxu0 0.0
  %1723 = vmatpush1.msra.mxu0 0.0
  %1724 = vmatprep.subr.mxu0 0.0
  %1725 = vmatpush1.msra.mxu0 0.0
  %1726 = vmatprep.mubr.f32.mxu0 0.0
  %1727 = vmatmul.mubr.f32.gmra.mrb[0].mxu0 %v1651
  %v1728 = vpop.f32.mrb[0].mxu0
  %v1729 = vadd.f32 %v1632, %v1728
  %v1730 = vpop.f32.mrb[0].mxu0
  %1731 = vmatprep.mubr.f32.mxu0 0.0
  %1732 = vmatmul.mubr.f32.gmra.mrb[0].mxu0 %v1654
  %v1733 = vpop.f32.mrb[0].mxu0
  %v1734 = vadd.f32 %v1637, %v1733
  %v1735 = vpop.f32.mrb[0].mxu0
  %1736 = vmatprep.mubr.f32.mxu0 0.0
  %1737 = vmatmul.mubr.f32.gmra.mrb[0].mxu0 %v1657
  %v1738 = vpop.f32.mrb[0].mxu0
  %v1739 = vadd.f32 %v1642, %v1738
  %v1740 = vpop.f32.mrb[0].mxu0
  %1741 = vmatprep.mubr.f32.mxu0 0.0
  %1742 = vmatmul.mubr.f32.gmra.mrb[0].mxu0 %v1660
  %v1743 = vpop.f32.mrb[0].mxu0
  %v1744 = vadd.f32 %v1647, %v1743
  %v1745 = vpop.f32.mrb[0].mxu0
  %1746 = vdwg.mxu0
  %vm1747 = vcmp.gt.f32.partialorder %v1729, 0.0
  %vm1748 = vcmp.gt.f32.partialorder %v1734, 0.0
  %vm1749 = vcmp.gt.f32.partialorder %v1739, 0.0
  %vm1750 = vcmp.gt.f32.partialorder %v1744, 0.0
  %v1751 = vmul.f32 %v1729, 1.442695
  %v1752 = vpow.pop %v1751
  %v1753 = vmul.f32 %v1734, 1.442695
  %v1754 = vpow.pop %v1753
  %v1755 = vmul.f32 %v1739, 1.442695
  %v1756 = vpow.pop %v1755
  %v1757 = vmul.f32 %v1744, 1.442695
  %v1758 = vpow.pop %v1757
  %v1759 = vsub.f32 %v1752, 1.0
  %v1760 = vsub.f32 %v1754, 1.0
  %v1761 = vsub.f32 %v1756, 1.0
  %v1762 = vsub.f32 %v1758, 1.0
  %v1763 = vsel %vm1747, %v1729, %v1759
  %v1764 = vsel %vm1748, %v1734, %v1760
  %v1765 = vsel %vm1749, %v1739, %v1761
  %v1766 = vsel %vm1750, %v1744, %v1762
  %1771 = vrot.lane.b32.xlu0 %v1763, 10
  %v1772 = vpop.permute.xlu0 %1771
  %1773 = vrot.lane.b32.xlu0 %v1764, 10
  %v1774 = vpop.permute.xlu0 %1773
  %1775 = vrot.lane.b32.xlu0 %v1765, 10
  %v1776 = vpop.permute.xlu0 %1775
  %1777 = vrot.lane.b32.xlu0 %v1766, 10
  %v1778 = vpop.permute.xlu0 %1777
  %vm1783 = vcmask 80896
  %v1784 = vsel %vm1783, 0.0, %v1772
  %v1785 = vsel %vm1783, 0.0, %v1774
  %v1786 = vsel %vm1783, 0.0, %v1776
  %v1787 = vsel %vm1783, 0.0, %v1778
  %vm1788 = vcmask 547840
  %v1789 = vsel %vm1788, %v1784, 0.0
  %v1790 = vsel %vm1788, %v1785, 0.0
  %v1791 = vsel %vm1788, %v1786, 0.0
  %v1792 = vsel %vm1788, %v1787, 0.0
  %v1793 = vld [vmem:[%s4] sm:$0xff]
  %v1794 = vld [vmem:[%s4 + $0x8] sm:$0xff]
  %v1795 = vld [vmem:[%s4 + $0x10] sm:$0xff]
  %v1796 = vld [vmem:[%s4 + $0x18] sm:$0xff]
  %1798 = vset.pattern.permute.xlu0 0
  %1799 = vperm.xlu0 %1798, %v1793
  %v1800 = vpop.permute.xlu0 %1799
  %1803 = vset.pattern.permute.xlu0 0
  %1804 = vperm.xlu0 %1803, %v1794
  %v1805 = vpop.permute.xlu0 %1804
  %1808 = vset.pattern.permute.xlu0 0
  %1809 = vperm.xlu0 %1808, %v1795
  %v1810 = vpop.permute.xlu0 %1809
  %1813 = vset.pattern.permute.xlu0 0
  %1814 = vperm.xlu0 %1813, %v1796
  %v1815 = vpop.permute.xlu0 %1814
  %v1817 = vmul.f32 %v1800, %v1789
  %v1818 = vmul.f32 %v1805, %v1790
  %v1819 = vmul.f32 %v1810, %v1791
  %v1820 = vmul.f32 %v1815, %v1792
  %1821 = vset.pattern.permute.xlu0 1
  %1822 = vperm.xlu0 %1821, %v1793
  %v1823 = vpop.permute.xlu0 %1822
  %1825 = vset.pattern.permute.xlu0 1
  %1826 = vperm.xlu0 %1825, %v1794
  %v1827 = vpop.permute.xlu0 %1826
  %1829 = vset.pattern.permute.xlu0 1
  %1830 = vperm.xlu0 %1829, %v1795
  %v1831 = vpop.permute.xlu0 %1830
  %1833 = vset.pattern.permute.xlu0 1
  %1834 = vperm.xlu0 %1833, %v1796
  %v1835 = vpop.permute.xlu0 %1834
  %v1837 = vmul.f32 %v1823, %v1789
  %v1838 = vmul.f32 %v1827, %v1790
  %v1839 = vmul.f32 %v1831, %v1791
  %v1840 = vmul.f32 %v1835, %v1792
  %1845 = vrot.lane.b32.xlu0 %v1837, 127
  %v1846 = vpop.permute.xlu0 %1845
  %1847 = vrot.lane.b32.xlu0 %v1838, 127
  %v1848 = vpop.permute.xlu0 %1847
  %1849 = vrot.lane.b32.xlu0 %v1839, 127
  %v1850 = vpop.permute.xlu0 %1849
  %1851 = vrot.lane.b32.xlu0 %v1840, 127
  %v1852 = vpop.permute.xlu0 %1851
  %v1857 = vadd.f32 %v1817, %v1846
  %v1858 = vadd.f32 %v1818, %v1848
  %v1859 = vadd.f32 %v1819, %v1850
  %v1860 = vadd.f32 %v1820, %v1852
  %1861 = vset.pattern.permute.xlu0 2
  %1862 = vperm.xlu0 %1861, %v1793
  %v1863 = vpop.permute.xlu0 %1862
  %1865 = vset.pattern.permute.xlu0 2
  %1866 = vperm.xlu0 %1865, %v1794
  %v1867 = vpop.permute.xlu0 %1866
  %1869 = vset.pattern.permute.xlu0 2
  %1870 = vperm.xlu0 %1869, %v1795
  %v1871 = vpop.permute.xlu0 %1870
  %1873 = vset.pattern.permute.xlu0 2
  %1874 = vperm.xlu0 %1873, %v1796
  %v1875 = vpop.permute.xlu0 %1874
  %v1877 = vmul.f32 %v1863, %v1789
  %v1878 = vmul.f32 %v1867, %v1790
  %v1879 = vmul.f32 %v1871, %v1791
  %v1880 = vmul.f32 %v1875, %v1792
  %1885 = vrot.lane.b32.xlu0 %v1877, 126
  %v1886 = vpop.permute.xlu0 %1885
  %1887 = vrot.lane.b32.xlu0 %v1878, 126
  %v1888 = vpop.permute.xlu0 %1887
  %1889 = vrot.lane.b32.xlu0 %v1879, 126
  %v1890 = vpop.permute.xlu0 %1889
  %1891 = vrot.lane.b32.xlu0 %v1880, 126
  %v1892 = vpop.permute.xlu0 %1891
  %v1897 = vadd.f32 %v1857, %v1886
  %v1898 = vadd.f32 %v1858, %v1888
  %v1899 = vadd.f32 %v1859, %v1890
  %v1900 = vadd.f32 %v1860, %v1892
  %1901 = vset.pattern.permute.xlu0 3
  %1902 = vperm.xlu0 %1901, %v1793
  %v1903 = vpop.permute.xlu0 %1902
  %1905 = vset.pattern.permute.xlu0 3
  %1906 = vperm.xlu0 %1905, %v1794
  %v1907 = vpop.permute.xlu0 %1906
  %1909 = vset.pattern.permute.xlu0 3
  %1910 = vperm.xlu0 %1909, %v1795
  %v1911 = vpop.permute.xlu0 %1910
  %1913 = vset.pattern.permute.xlu0 3
  %1914 = vperm.xlu0 %1913, %v1796
  %v1915 = vpop.permute.xlu0 %1914
  %v1917 = vmul.f32 %v1903, %v1789
  %v1918 = vmul.f32 %v1907, %v1790
  %v1919 = vmul.f32 %v1911, %v1791
  %v1920 = vmul.f32 %v1915, %v1792
  %1925 = vrot.lane.b32.xlu0 %v1917, 125
  %v1926 = vpop.permute.xlu0 %1925
  %1927 = vrot.lane.b32.xlu0 %v1918, 125
  %v1928 = vpop.permute.xlu0 %1927
  %1929 = vrot.lane.b32.xlu0 %v1919, 125
  %v1930 = vpop.permute.xlu0 %1929
  %1931 = vrot.lane.b32.xlu0 %v1920, 125
  %v1932 = vpop.permute.xlu0 %1931
  %v1937 = vadd.f32 %v1897, %v1926
  %v1938 = vadd.f32 %v1898, %v1928
  %v1939 = vadd.f32 %v1899, %v1930
  %v1940 = vadd.f32 %v1900, %v1932
  %1941 = vset.pattern.permute.xlu0 4
  %1942 = vperm.xlu0 %1941, %v1793
  %v1943 = vpop.permute.xlu0 %1942
  %1945 = vset.pattern.permute.xlu0 4
  %1946 = vperm.xlu0 %1945, %v1794
  %v1947 = vpop.permute.xlu0 %1946
  %1949 = vset.pattern.permute.xlu0 4
  %1950 = vperm.xlu0 %1949, %v1795
  %v1951 = vpop.permute.xlu0 %1950
  %1953 = vset.pattern.permute.xlu0 4
  %1954 = vperm.xlu0 %1953, %v1796
  %v1955 = vpop.permute.xlu0 %1954
  %v1957 = vmul.f32 %v1943, %v1789
  %v1958 = vmul.f32 %v1947, %v1790
  %v1959 = vmul.f32 %v1951, %v1791
  %v1960 = vmul.f32 %v1955, %v1792
  %1965 = vrot.lane.b32.xlu0 %v1957, 124
  %v1966 = vpop.permute.xlu0 %1965
  %1967 = vrot.lane.b32.xlu0 %v1958, 124
  %v1968 = vpop.permute.xlu0 %1967
  %1969 = vrot.lane.b32.xlu0 %v1959, 124
  %v1970 = vpop.permute.xlu0 %1969
  %1971 = vrot.lane.b32.xlu0 %v1960, 124
  %v1972 = vpop.permute.xlu0 %1971
  %v1977 = vadd.f32 %v1937, %v1966
  %v1978 = vadd.f32 %v1938, %v1968
  %v1979 = vadd.f32 %v1939, %v1970
  %v1980 = vadd.f32 %v1940, %v1972
  %1981 = vset.pattern.permute.xlu0 5
  %1982 = vperm.xlu0 %1981, %v1793
  %v1983 = vpop.permute.xlu0 %1982
  %1985 = vset.pattern.permute.xlu0 5
  %1986 = vperm.xlu0 %1985, %v1794
  %v1987 = vpop.permute.xlu0 %1986
  %1989 = vset.pattern.permute.xlu0 5
  %1990 = vperm.xlu0 %1989, %v1795
  %v1991 = vpop.permute.xlu0 %1990
  %1993 = vset.pattern.permute.xlu0 5
  %1994 = vperm.xlu0 %1993, %v1796
  %v1995 = vpop.permute.xlu0 %1994
  %v1997 = vmul.f32 %v1983, %v1789
  %v1998 = vmul.f32 %v1987, %v1790
  %v1999 = vmul.f32 %v1991, %v1791
  %v2000 = vmul.f32 %v1995, %v1792
  %2005 = vrot.lane.b32.xlu0 %v1997, 123
  %v2006 = vpop.permute.xlu0 %2005
  %2007 = vrot.lane.b32.xlu0 %v1998, 123
  %v2008 = vpop.permute.xlu0 %2007
  %2009 = vrot.lane.b32.xlu0 %v1999, 123
  %v2010 = vpop.permute.xlu0 %2009
  %2011 = vrot.lane.b32.xlu0 %v2000, 123
  %v2012 = vpop.permute.xlu0 %2011
  %v2017 = vadd.f32 %v1977, %v2006
  %v2018 = vadd.f32 %v1978, %v2008
  %v2019 = vadd.f32 %v1979, %v2010
  %v2020 = vadd.f32 %v1980, %v2012
  %2021 = vset.pattern.permute.xlu0 6
  %2022 = vperm.xlu0 %2021, %v1793
  %v2023 = vpop.permute.xlu0 %2022
  %2025 = vset.pattern.permute.xlu0 6
  %2026 = vperm.xlu0 %2025, %v1794
  %v2027 = vpop.permute.xlu0 %2026
  %2029 = vset.pattern.permute.xlu0 6
  %2030 = vperm.xlu0 %2029, %v1795
  %v2031 = vpop.permute.xlu0 %2030
  %2033 = vset.pattern.permute.xlu0 6
  %2034 = vperm.xlu0 %2033, %v1796
  %v2035 = vpop.permute.xlu0 %2034
  %v2037 = vmul.f32 %v2023, %v1789
  %v2038 = vmul.f32 %v2027, %v1790
  %v2039 = vmul.f32 %v2031, %v1791
  %v2040 = vmul.f32 %v2035, %v1792
  %2045 = vrot.lane.b32.xlu0 %v2037, 122
  %v2046 = vpop.permute.xlu0 %2045
  %2047 = vrot.lane.b32.xlu0 %v2038, 122
  %v2048 = vpop.permute.xlu0 %2047
  %2049 = vrot.lane.b32.xlu0 %v2039, 122
  %v2050 = vpop.permute.xlu0 %2049
  %2051 = vrot.lane.b32.xlu0 %v2040, 122
  %v2052 = vpop.permute.xlu0 %2051
  %v2057 = vadd.f32 %v2017, %v2046
  %v2058 = vadd.f32 %v2018, %v2048
  %v2059 = vadd.f32 %v2019, %v2050
  %v2060 = vadd.f32 %v2020, %v2052
  %2061 = vset.pattern.permute.xlu0 7
  %2062 = vperm.xlu0 %2061, %v1793
  %v2063 = vpop.permute.xlu0 %2062
  %2065 = vset.pattern.permute.xlu0 7
  %2066 = vperm.xlu0 %2065, %v1794
  %v2067 = vpop.permute.xlu0 %2066
  %2069 = vset.pattern.permute.xlu0 7
  %2070 = vperm.xlu0 %2069, %v1795
  %v2071 = vpop.permute.xlu0 %2070
  %2073 = vset.pattern.permute.xlu0 7
  %2074 = vperm.xlu0 %2073, %v1796
  %v2075 = vpop.permute.xlu0 %2074
  %v2077 = vmul.f32 %v2063, %v1789
  %v2078 = vmul.f32 %v2067, %v1790
  %v2079 = vmul.f32 %v2071, %v1791
  %v2080 = vmul.f32 %v2075, %v1792
  %2085 = vrot.lane.b32.xlu0 %v2077, 121
  %v2086 = vpop.permute.xlu0 %2085
  %2087 = vrot.lane.b32.xlu0 %v2078, 121
  %v2088 = vpop.permute.xlu0 %2087
  %2089 = vrot.lane.b32.xlu0 %v2079, 121
  %v2090 = vpop.permute.xlu0 %2089
  %2091 = vrot.lane.b32.xlu0 %v2080, 121
  %v2092 = vpop.permute.xlu0 %2091
  %v2097 = vadd.f32 %v2057, %v2086
  %v2098 = vadd.f32 %v2058, %v2088
  %v2099 = vadd.f32 %v2059, %v2090
  %v2100 = vadd.f32 %v2060, %v2092
  %2101 = vset.pattern.permute.xlu0 8
  %2102 = vperm.xlu0 %2101, %v1793
  %v2103 = vpop.permute.xlu0 %2102
  %2105 = vset.pattern.permute.xlu0 8
  %2106 = vperm.xlu0 %2105, %v1794
  %v2107 = vpop.permute.xlu0 %2106
  %2109 = vset.pattern.permute.xlu0 8
  %2110 = vperm.xlu0 %2109, %v1795
  %v2111 = vpop.permute.xlu0 %2110
  %2113 = vset.pattern.permute.xlu0 8
  %2114 = vperm.xlu0 %2113, %v1796
  %v2115 = vpop.permute.xlu0 %2114
  %v2117 = vmul.f32 %v2103, %v1789
  %v2118 = vmul.f32 %v2107, %v1790
  %v2119 = vmul.f32 %v2111, %v1791
  %v2120 = vmul.f32 %v2115, %v1792
  %2125 = vrot.lane.b32.xlu0 %v2117, 120
  %v2126 = vpop.permute.xlu0 %2125
  %2127 = vrot.lane.b32.xlu0 %v2118, 120
  %v2128 = vpop.permute.xlu0 %2127
  %2129 = vrot.lane.b32.xlu0 %v2119, 120
  %v2130 = vpop.permute.xlu0 %2129
  %2131 = vrot.lane.b32.xlu0 %v2120, 120
  %v2132 = vpop.permute.xlu0 %2131
  %v2137 = vadd.f32 %v2097, %v2126
  %v2138 = vadd.f32 %v2098, %v2128
  %v2139 = vadd.f32 %v2099, %v2130
  %v2140 = vadd.f32 %v2100, %v2132
  %2141 = vset.pattern.permute.xlu0 9
  %2142 = vperm.xlu0 %2141, %v1793
  %v2143 = vpop.permute.xlu0 %2142
  %2145 = vset.pattern.permute.xlu0 9
  %2146 = vperm.xlu0 %2145, %v1794
  %v2147 = vpop.permute.xlu0 %2146
  %2149 = vset.pattern.permute.xlu0 9
  %2150 = vperm.xlu0 %2149, %v1795
  %v2151 = vpop.permute.xlu0 %2150
  %2153 = vset.pattern.permute.xlu0 9
  %2154 = vperm.xlu0 %2153, %v1796
  %v2155 = vpop.permute.xlu0 %2154
  %v2157 = vmul.f32 %v2143, %v1789
  %v2158 = vmul.f32 %v2147, %v1790
  %v2159 = vmul.f32 %v2151, %v1791
  %v2160 = vmul.f32 %v2155, %v1792
  %2165 = vrot.lane.b32.xlu0 %v2157, 119
  %v2166 = vpop.permute.xlu0 %2165
  %2167 = vrot.lane.b32.xlu0 %v2158, 119
  %v2168 = vpop.permute.xlu0 %2167
  %2169 = vrot.lane.b32.xlu0 %v2159, 119
  %v2170 = vpop.permute.xlu0 %2169
  %2171 = vrot.lane.b32.xlu0 %v2160, 119
  %v2172 = vpop.permute.xlu0 %2171
  %v2177 = vadd.f32 %v2137, %v2166
  %v2178 = vadd.f32 %v2138, %v2168
  %v2179 = vadd.f32 %v2139, %v2170
  %v2180 = vadd.f32 %v2140, %v2172
  %2181 = vset.pattern.permute.xlu0 10
  %2182 = vperm.xlu0 %2181, %v1793
  %v2183 = vpop.permute.xlu0 %2182
  %2185 = vset.pattern.permute.xlu0 10
  %2186 = vperm.xlu0 %2185, %v1794
  %v2187 = vpop.permute.xlu0 %2186
  %2189 = vset.pattern.permute.xlu0 10
  %2190 = vperm.xlu0 %2189, %v1795
  %v2191 = vpop.permute.xlu0 %2190
  %2193 = vset.pattern.permute.xlu0 10
  %2194 = vperm.xlu0 %2193, %v1796
  %v2195 = vpop.permute.xlu0 %2194
  %v2197 = vmul.f32 %v2183, %v1789
  %v2198 = vmul.f32 %v2187, %v1790
  %v2199 = vmul.f32 %v2191, %v1791
  %v2200 = vmul.f32 %v2195, %v1792
  %2205 = vrot.lane.b32.xlu0 %v2197, 118
  %v2206 = vpop.permute.xlu0 %2205
  %2207 = vrot.lane.b32.xlu0 %v2198, 118
  %v2208 = vpop.permute.xlu0 %2207
  %2209 = vrot.lane.b32.xlu0 %v2199, 118
  %v2210 = vpop.permute.xlu0 %2209
  %2211 = vrot.lane.b32.xlu0 %v2200, 118
  %v2212 = vpop.permute.xlu0 %2211
  %v2217 = vadd.f32 %v2177, %v2206
  %v2218 = vadd.f32 %v2178, %v2208
  %v2219 = vadd.f32 %v2179, %v2210
  %v2220 = vadd.f32 %v2180, %v2212
  %2221 = vset.pattern.permute.xlu0 11
  %2222 = vperm.xlu0 %2221, %v1793
  %v2223 = vpop.permute.xlu0 %2222
  %2225 = vset.pattern.permute.xlu0 11
  %2226 = vperm.xlu0 %2225, %v1794
  %v2227 = vpop.permute.xlu0 %2226
  %2229 = vset.pattern.permute.xlu0 11
  %2230 = vperm.xlu0 %2229, %v1795
  %v2231 = vpop.permute.xlu0 %2230
  %2233 = vset.pattern.permute.xlu0 11
  %2234 = vperm.xlu0 %2233, %v1796
  %v2235 = vpop.permute.xlu0 %2234
  %v2237 = vmul.f32 %v2223, %v1789
  %v2238 = vmul.f32 %v2227, %v1790
  %v2239 = vmul.f32 %v2231, %v1791
  %v2240 = vmul.f32 %v2235, %v1792
  %2245 = vrot.lane.b32.xlu0 %v2237, 117
  %v2246 = vpop.permute.xlu0 %2245
  %2247 = vrot.lane.b32.xlu0 %v2238, 117
  %v2248 = vpop.permute.xlu0 %2247
  %2249 = vrot.lane.b32.xlu0 %v2239, 117
  %v2250 = vpop.permute.xlu0 %2249
  %2251 = vrot.lane.b32.xlu0 %v2240, 117
  %v2252 = vpop.permute.xlu0 %2251
  %v2257 = vadd.f32 %v2217, %v2246
  %v2258 = vadd.f32 %v2218, %v2248
  %v2259 = vadd.f32 %v2219, %v2250
  %v2260 = vadd.f32 %v2220, %v2252
  %2261 = vset.pattern.permute.xlu0 12
  %2262 = vperm.xlu0 %2261, %v1793
  %v2263 = vpop.permute.xlu0 %2262
  %2265 = vset.pattern.permute.xlu0 12
  %2266 = vperm.xlu0 %2265, %v1794
  %v2267 = vpop.permute.xlu0 %2266
  %2269 = vset.pattern.permute.xlu0 12
  %2270 = vperm.xlu0 %2269, %v1795
  %v2271 = vpop.permute.xlu0 %2270
  %2273 = vset.pattern.permute.xlu0 12
  %2274 = vperm.xlu0 %2273, %v1796
  %v2275 = vpop.permute.xlu0 %2274
  %v2277 = vmul.f32 %v2263, %v1789
  %v2278 = vmul.f32 %v2267, %v1790
  %v2279 = vmul.f32 %v2271, %v1791
  %v2280 = vmul.f32 %v2275, %v1792
  %2285 = vrot.lane.b32.xlu0 %v2277, 116
  %v2286 = vpop.permute.xlu0 %2285
  %2287 = vrot.lane.b32.xlu0 %v2278, 116
  %v2288 = vpop.permute.xlu0 %2287
  %2289 = vrot.lane.b32.xlu0 %v2279, 116
  %v2290 = vpop.permute.xlu0 %2289
  %2291 = vrot.lane.b32.xlu0 %v2280, 116
  %v2292 = vpop.permute.xlu0 %2291
  %v2297 = vadd.f32 %v2257, %v2286
  %v2298 = vadd.f32 %v2258, %v2288
  %v2299 = vadd.f32 %v2259, %v2290
  %v2300 = vadd.f32 %v2260, %v2292
  %2301 = vset.pattern.permute.xlu0 13
  %2302 = vperm.xlu0 %2301, %v1793
  %v2303 = vpop.permute.xlu0 %2302
  %2305 = vset.pattern.permute.xlu0 13
  %2306 = vperm.xlu0 %2305, %v1794
  %v2307 = vpop.permute.xlu0 %2306
  %2309 = vset.pattern.permute.xlu0 13
  %2310 = vperm.xlu0 %2309, %v1795
  %v2311 = vpop.permute.xlu0 %2310
  %2313 = vset.pattern.permute.xlu0 13
  %2314 = vperm.xlu0 %2313, %v1796
  %v2315 = vpop.permute.xlu0 %2314
  %v2317 = vmul.f32 %v2303, %v1789
  %v2318 = vmul.f32 %v2307, %v1790
  %v2319 = vmul.f32 %v2311, %v1791
  %v2320 = vmul.f32 %v2315, %v1792
  %2325 = vrot.lane.b32.xlu0 %v2317, 115
  %v2326 = vpop.permute.xlu0 %2325
  %2327 = vrot.lane.b32.xlu0 %v2318, 115
  %v2328 = vpop.permute.xlu0 %2327
  %2329 = vrot.lane.b32.xlu0 %v2319, 115
  %v2330 = vpop.permute.xlu0 %2329
  %2331 = vrot.lane.b32.xlu0 %v2320, 115
  %v2332 = vpop.permute.xlu0 %2331
  %v2337 = vadd.f32 %v2297, %v2326
  %v2338 = vadd.f32 %v2298, %v2328
  %v2339 = vadd.f32 %v2299, %v2330
  %v2340 = vadd.f32 %v2300, %v2332
  %2341 = vset.pattern.permute.xlu0 14
  %2342 = vperm.xlu0 %2341, %v1793
  %v2343 = vpop.permute.xlu0 %2342
  %2345 = vset.pattern.permute.xlu0 14
  %2346 = vperm.xlu0 %2345, %v1794
  %v2347 = vpop.permute.xlu0 %2346
  %2349 = vset.pattern.permute.xlu0 14
  %2350 = vperm.xlu0 %2349, %v1795
  %v2351 = vpop.permute.xlu0 %2350
  %2353 = vset.pattern.permute.xlu0 14
  %2354 = vperm.xlu0 %2353, %v1796
  %v2355 = vpop.permute.xlu0 %2354
  %v2357 = vmul.f32 %v2343, %v1789
  %v2358 = vmul.f32 %v2347, %v1790
  %v2359 = vmul.f32 %v2351, %v1791
  %v2360 = vmul.f32 %v2355, %v1792
  %2365 = vrot.lane.b32.xlu0 %v2357, 114
  %v2366 = vpop.permute.xlu0 %2365
  %2367 = vrot.lane.b32.xlu0 %v2358, 114
  %v2368 = vpop.permute.xlu0 %2367
  %2369 = vrot.lane.b32.xlu0 %v2359, 114
  %v2370 = vpop.permute.xlu0 %2369
  %2371 = vrot.lane.b32.xlu0 %v2360, 114
  %v2372 = vpop.permute.xlu0 %2371
  %v2377 = vadd.f32 %v2337, %v2366
  %v2378 = vadd.f32 %v2338, %v2368
  %v2379 = vadd.f32 %v2339, %v2370
  %v2380 = vadd.f32 %v2340, %v2372
  %2381 = vset.pattern.permute.xlu0 15
  %2382 = vperm.xlu0 %2381, %v1793
  %v2383 = vpop.permute.xlu0 %2382
  %2385 = vset.pattern.permute.xlu0 15
  %2386 = vperm.xlu0 %2385, %v1794
  %v2387 = vpop.permute.xlu0 %2386
  %2389 = vset.pattern.permute.xlu0 15
  %2390 = vperm.xlu0 %2389, %v1795
  %v2391 = vpop.permute.xlu0 %2390
  %2393 = vset.pattern.permute.xlu0 15
  %2394 = vperm.xlu0 %2393, %v1796
  %v2395 = vpop.permute.xlu0 %2394
  %v2397 = vmul.f32 %v2383, %v1789
  %v2398 = vmul.f32 %v2387, %v1790
  %v2399 = vmul.f32 %v2391, %v1791
  %v2400 = vmul.f32 %v2395, %v1792
  %2405 = vrot.lane.b32.xlu0 %v2397, 113
  %v2406 = vpop.permute.xlu0 %2405
  %2407 = vrot.lane.b32.xlu0 %v2398, 113
  %v2408 = vpop.permute.xlu0 %2407
  %2409 = vrot.lane.b32.xlu0 %v2399, 113
  %v2410 = vpop.permute.xlu0 %2409
  %2411 = vrot.lane.b32.xlu0 %v2400, 113
  %v2412 = vpop.permute.xlu0 %2411
  %v2417 = vadd.f32 %v2377, %v2406
  %v2418 = vadd.f32 %v2378, %v2408
  %v2419 = vadd.f32 %v2379, %v2410
  %v2420 = vadd.f32 %v2380, %v2412
  %2421 = vset.pattern.permute.xlu0 16
  %2422 = vperm.xlu0 %2421, %v1793
  %v2423 = vpop.permute.xlu0 %2422
  %2425 = vset.pattern.permute.xlu0 16
  %2426 = vperm.xlu0 %2425, %v1794
  %v2427 = vpop.permute.xlu0 %2426
  %2429 = vset.pattern.permute.xlu0 16
  %2430 = vperm.xlu0 %2429, %v1795
  %v2431 = vpop.permute.xlu0 %2430
  %2433 = vset.pattern.permute.xlu0 16
  %2434 = vperm.xlu0 %2433, %v1796
  %v2435 = vpop.permute.xlu0 %2434
  %v2437 = vmul.f32 %v2423, %v1789
  %v2438 = vmul.f32 %v2427, %v1790
  %v2439 = vmul.f32 %v2431, %v1791
  %v2440 = vmul.f32 %v2435, %v1792
  %2445 = vrot.lane.b32.xlu0 %v2437, 112
  %v2446 = vpop.permute.xlu0 %2445
  %2447 = vrot.lane.b32.xlu0 %v2438, 112
  %v2448 = vpop.permute.xlu0 %2447
  %2449 = vrot.lane.b32.xlu0 %v2439, 112
  %v2450 = vpop.permute.xlu0 %2449
  %2451 = vrot.lane.b32.xlu0 %v2440, 112
  %v2452 = vpop.permute.xlu0 %2451
  %v2457 = vadd.f32 %v2417, %v2446
  %v2458 = vadd.f32 %v2418, %v2448
  %v2459 = vadd.f32 %v2419, %v2450
  %v2460 = vadd.f32 %v2420, %v2452
  %2461 = vset.pattern.permute.xlu0 17
  %2462 = vperm.xlu0 %2461, %v1793
  %v2463 = vpop.permute.xlu0 %2462
  %2465 = vset.pattern.permute.xlu0 17
  %2466 = vperm.xlu0 %2465, %v1794
  %v2467 = vpop.permute.xlu0 %2466
  %2469 = vset.pattern.permute.xlu0 17
  %2470 = vperm.xlu0 %2469, %v1795
  %v2471 = vpop.permute.xlu0 %2470
  %2473 = vset.pattern.permute.xlu0 17
  %2474 = vperm.xlu0 %2473, %v1796
  %v2475 = vpop.permute.xlu0 %2474
  %v2477 = vmul.f32 %v2463, %v1789
  %v2478 = vmul.f32 %v2467, %v1790
  %v2479 = vmul.f32 %v2471, %v1791
  %v2480 = vmul.f32 %v2475, %v1792
  %2485 = vrot.lane.b32.xlu0 %v2477, 111
  %v2486 = vpop.permute.xlu0 %2485
  %2487 = vrot.lane.b32.xlu0 %v2478, 111
  %v2488 = vpop.permute.xlu0 %2487
  %2489 = vrot.lane.b32.xlu0 %v2479, 111
  %v2490 = vpop.permute.xlu0 %2489
  %2491 = vrot.lane.b32.xlu0 %v2480, 111
  %v2492 = vpop.permute.xlu0 %2491
  %v2497 = vadd.f32 %v2457, %v2486
  %v2498 = vadd.f32 %v2458, %v2488
  %v2499 = vadd.f32 %v2459, %v2490
  %v2500 = vadd.f32 %v2460, %v2492
  %2501 = vset.pattern.permute.xlu0 18
  %2502 = vperm.xlu0 %2501, %v1793
  %v2503 = vpop.permute.xlu0 %2502
  %2505 = vset.pattern.permute.xlu0 18
  %2506 = vperm.xlu0 %2505, %v1794
  %v2507 = vpop.permute.xlu0 %2506
  %2509 = vset.pattern.permute.xlu0 18
  %2510 = vperm.xlu0 %2509, %v1795
  %v2511 = vpop.permute.xlu0 %2510
  %2513 = vset.pattern.permute.xlu0 18
  %2514 = vperm.xlu0 %2513, %v1796
  %v2515 = vpop.permute.xlu0 %2514
  %v2517 = vmul.f32 %v2503, %v1789
  %v2518 = vmul.f32 %v2507, %v1790
  %v2519 = vmul.f32 %v2511, %v1791
  %v2520 = vmul.f32 %v2515, %v1792
  %2525 = vrot.lane.b32.xlu0 %v2517, 110
  %v2526 = vpop.permute.xlu0 %2525
  %2527 = vrot.lane.b32.xlu0 %v2518, 110
  %v2528 = vpop.permute.xlu0 %2527
  %2529 = vrot.lane.b32.xlu0 %v2519, 110
  %v2530 = vpop.permute.xlu0 %2529
  %2531 = vrot.lane.b32.xlu0 %v2520, 110
  %v2532 = vpop.permute.xlu0 %2531
  %v2537 = vadd.f32 %v2497, %v2526
  %v2538 = vadd.f32 %v2498, %v2528
  %v2539 = vadd.f32 %v2499, %v2530
  %v2540 = vadd.f32 %v2500, %v2532
  %2541 = vset.pattern.permute.xlu0 19
  %2542 = vperm.xlu0 %2541, %v1793
  %v2543 = vpop.permute.xlu0 %2542
  %2545 = vset.pattern.permute.xlu0 19
  %2546 = vperm.xlu0 %2545, %v1794
  %v2547 = vpop.permute.xlu0 %2546
  %2549 = vset.pattern.permute.xlu0 19
  %2550 = vperm.xlu0 %2549, %v1795
  %v2551 = vpop.permute.xlu0 %2550
  %2553 = vset.pattern.permute.xlu0 19
  %2554 = vperm.xlu0 %2553, %v1796
  %v2555 = vpop.permute.xlu0 %2554
  %v2557 = vmul.f32 %v2543, %v1789
  %v2558 = vmul.f32 %v2547, %v1790
  %v2559 = vmul.f32 %v2551, %v1791
  %v2560 = vmul.f32 %v2555, %v1792
  %2565 = vrot.lane.b32.xlu0 %v2557, 109
  %v2566 = vpop.permute.xlu0 %2565
  %2567 = vrot.lane.b32.xlu0 %v2558, 109
  %v2568 = vpop.permute.xlu0 %2567
  %2569 = vrot.lane.b32.xlu0 %v2559, 109
  %v2570 = vpop.permute.xlu0 %2569
  %2571 = vrot.lane.b32.xlu0 %v2560, 109
  %v2572 = vpop.permute.xlu0 %2571
  %v2577 = vadd.f32 %v2537, %v2566
  %v2578 = vadd.f32 %v2538, %v2568
  %v2579 = vadd.f32 %v2539, %v2570
  %v2580 = vadd.f32 %v2540, %v2572
  %v2581 = vld [vmem:[%s5] sm:$0xff]
  %v2582 = vld [vmem:[%s5 + $0x8] sm:$0xff]
  %v2583 = vld [vmem:[%s5 + $0x10] sm:$0xff]
  %v2584 = vld [vmem:[%s5 + $0x18] sm:$0xff]
  %v2585 = vld [vmem:[%s6] sm:$0xff]
  %v2586 = vld [vmem:[%s6 + $0x8] sm:$0xff]
  %v2587 = vld [vmem:[%s6 + $0x10] sm:$0xff]
  %v2588 = vld [vmem:[%s6 + $0x18] sm:$0xff]
  %2590 = vset.pattern.permute.xlu0 0
  %2591 = vperm.xlu0 %2590, %v2585
  %v2592 = vpop.permute.xlu0 %2591
  %2595 = vset.pattern.permute.xlu0 0
  %2596 = vperm.xlu0 %2595, %v2586
  %v2597 = vpop.permute.xlu0 %2596
  %2600 = vset.pattern.permute.xlu0 0
  %2601 = vperm.xlu0 %2600, %v2587
  %v2602 = vpop.permute.xlu0 %2601
  %2605 = vset.pattern.permute.xlu0 0
  %2606 = vperm.xlu0 %2605, %v2588
  %v2607 = vpop.permute.xlu0 %2606
  %vm2609 = vcmask 261120
  %v2611 = vsel %vm2609, %v2581, 0
  %v2614 = vsel %vm2609, %v2582, 0
  %v2617 = vsel %vm2609, %v2583, 0
  %v2620 = vsel %vm2609, %v2584, 0
  %2622 = vmatprep.subr.mxu0 0.0
  %2623 = vmatpush1.msra.mxu0 %v2577
  %2624 = vmatprep.subr.mxu0 0.0
  %2625 = vmatpush1.msra.mxu0 %v2578
  %2626 = vmatprep.subr.mxu0 0.0
  %2627 = vmatpush1.msra.mxu0 %v2579
  %2628 = vmatprep.subr.mxu0 0.0
  %2629 = vmatpush1.msra.mxu0 %v2580
  %2630 = vmatprep.subr.mxu0 0.0
  %2631 = vmatpush1.msra.mxu0 0.0
  %2632 = vmatprep.subr.mxu0 0.0
  %2633 = vmatpush1.msra.mxu0 0.0
  %2634 = vmatprep.subr.mxu0 0.0
  %2635 = vmatpush1.msra.mxu0 0.0
  %2636 = vmatprep.subr.mxu0 0.0
  %2637 = vmatpush1.msra.mxu0 0.0
  %2638 = vmatprep.subr.mxu0 0.0
  %2639 = vmatpush1.msra.mxu0 0.0
  %2640 = vmatprep.subr.mxu0 0.0
  %2641 = vmatpush1.msra.mxu0 0.0
  %2642 = vmatprep.subr.mxu0 0.0
  %2643 = vmatpush1.msra.mxu0 0.0
  %2644 = vmatprep.subr.mxu0 0.0
  %2645 = vmatpush1.msra.mxu0 0.0
  %2646 = vmatprep.subr.mxu0 0.0
  %2647 = vmatpush1.msra.mxu0 0.0
  %2648 = vmatprep.subr.mxu0 0.0
  %2649 = vmatpush1.msra.mxu0 0.0
  %2650 = vmatprep.subr.mxu0 0.0
  %2651 = vmatpush1.msra.mxu0 0.0
  %2652 = vmatprep.subr.mxu0 0.0
  %2653 = vmatpush1.msra.mxu0 0.0
  %2654 = vmatprep.subr.mxu0 0.0
  %2655 = vmatpush1.msra.mxu0 0.0
  %2656 = vmatprep.subr.mxu0 0.0
  %2657 = vmatpush1.msra.mxu0 0.0
  %2658 = vmatprep.subr.mxu0 0.0
  %2659 = vmatpush1.msra.mxu0 0.0
  %2660 = vmatprep.subr.mxu0 0.0
  %2661 = vmatpush1.msra.mxu0 0.0
  %2662 = vmatprep.subr.mxu0 0.0
  %2663 = vmatpush1.msra.mxu0 0.0
  %2664 = vmatprep.subr.mxu0 0.0
  %2665 = vmatpush1.msra.mxu0 0.0
  %2666 = vmatprep.subr.mxu0 0.0
  %2667 = vmatpush1.msra.mxu0 0.0
  %2668 = vmatprep.subr.mxu0 0.0
  %2669 = vmatpush1.msra.mxu0 0.0
  %2670 = vmatprep.subr.mxu0 0.0
  %2671 = vmatpush1.msra.mxu0 0.0
  %2672 = vmatprep.subr.mxu0 0.0
  %2673 = vmatpush1.msra.mxu0 0.0
  %2674 = vmatprep.subr.mxu0 0.0
  %2675 = vmatpush1.msra.mxu0 0.0
  %2676 = vmatprep.subr.mxu0 0.0
  %2677 = vmatpush1.msra.mxu0 0.0
  %2678 = vmatprep.subr.mxu0 0.0
  %2679 = vmatpush1.msra.mxu0 0.0
  %2680 = vmatprep.subr.mxu0 0.0
  %2681 = vmatpush1.msra.mxu0 0.0
  %2682 = vmatprep.subr.mxu0 0.0
  %2683 = vmatpush1.msra.mxu0 0.0
  %2684 = vmatprep.subr.mxu0 0.0
  %2685 = vmatpush1.msra.mxu0 0.0
  %2686 = vmatprep.mubr.f32.mxu0 0.0
  %2687 = vmatmul.mubr.f32.gmra.mrb[0].mxu0 %v2611
  %v2688 = vpop.f32.mrb[0].mxu0
  %v2689 = vadd.f32 %v2592, %v2688
  %v2690 = vpop.f32.mrb[0].mxu0
  %2691 = vmatprep.mubr.f32.mxu0 0.0
  %2692 = vmatmul.mubr.f32.gmra.mrb[0].mxu0 %v2614
  %v2693 = vpop.f32.mrb[0].mxu0
  %v2694 = vadd.f32 %v2597, %v2693
  %v2695 = vpop.f32.mrb[0].mxu0
  %2696 = vmatprep.mubr.f32.mxu0 0.0
  %2697 = vmatmul.mubr.f32.gmra.mrb[0].mxu0 %v2617
  %v2698 = vpop.f32.mrb[0].mxu0
  %v2699 = vadd.f32 %v2602, %v2698
  %v2700 = vpop.f32.mrb[0].mxu0
  %2701 = vmatprep.mubr.f32.mxu0 0.0
  %2702 = vmatmul.mubr.f32.gmra.mrb[0].mxu0 %v2620
  %v2703 = vpop.f32.mrb[0].mxu0
  %v2704 = vadd.f32 %v2607, %v2703
  %v2705 = vpop.f32.mrb[0].mxu0
  %2706 = vdwg.mxu0
  %vm2707 = vcmp.gt.f32.partialorder %v2689, 0.0
  %vm2708 = vcmp.gt.f32.partialorder %v2694, 0.0
  %vm2709 = vcmp.gt.f32.partialorder %v2699, 0.0
  %vm2710 = vcmp.gt.f32.partialorder %v2704, 0.0
  %v2711 = vmul.f32 %v2689, 1.442695
  %v2712 = vpow.pop %v2711
  %v2713 = vmul.f32 %v2694, 1.442695
  %v2714 = vpow.pop %v2713
  %v2715 = vmul.f32 %v2699, 1.442695
  %v2716 = vpow.pop %v2715
  %v2717 = vmul.f32 %v2704, 1.442695
  %v2718 = vpow.pop %v2717
  %v2719 = vsub.f32 %v2712, 1.0
  %v2720 = vsub.f32 %v2714, 1.0
  %v2721 = vsub.f32 %v2716, 1.0
  %v2722 = vsub.f32 %v2718, 1.0
  %v2723 = vsel %vm2707, %v2689, %v2719
  %v2724 = vsel %vm2708, %v2694, %v2720
  %v2725 = vsel %vm2709, %v2699, %v2721
  %v2726 = vsel %vm2710, %v2704, %v2722
  %v2727 = vld [vmem:[%s7] sm:$0x3]
  %v2729 = vsel %vm2609, %v2727, 0
  %2731 = vmatprep.subr.mxu0 0.0
  %2732 = vmatpush1.msra.mxu0 %v2723
  %2733 = vmatprep.subr.mxu0 0.0
  %2734 = vmatpush1.msra.mxu0 %v2724
  %2735 = vmatprep.subr.mxu0 0.0
  %2736 = vmatpush1.msra.mxu0 %v2725
  %2737 = vmatprep.subr.mxu0 0.0
  %2738 = vmatpush1.msra.mxu0 %v2726
  %2739 = vmatprep.subr.mxu0 0.0
  %2740 = vmatpush1.msra.mxu0 0.0
  %2741 = vmatprep.subr.mxu0 0.0
  %2742 = vmatpush1.msra.mxu0 0.0
  %2743 = vmatprep.subr.mxu0 0.0
  %2744 = vmatpush1.msra.mxu0 0.0
  %2745 = vmatprep.subr.mxu0 0.0
  %2746 = vmatpush1.msra.mxu0 0.0
  %2747 = vmatprep.subr.mxu0 0.0
  %2748 = vmatpush1.msra.mxu0 0.0
  %2749 = vmatprep.subr.mxu0 0.0
  %2750 = vmatpush1.msra.mxu0 0.0
  %2751 = vmatprep.subr.mxu0 0.0
  %2752 = vmatpush1.msra.mxu0 0.0
  %2753 = vmatprep.subr.mxu0 0.0
  %2754 = vmatpush1.msra.mxu0 0.0
  %2755 = vmatprep.subr.mxu0 0.0
  %2756 = vmatpush1.msra.mxu0 0.0
  %2757 = vmatprep.subr.mxu0 0.0
  %2758 = vmatpush1.msra.mxu0 0.0
  %2759 = vmatprep.subr.mxu0 0.0
  %2760 = vmatpush1.msra.mxu0 0.0
  %2761 = vmatprep.subr.mxu0 0.0
  %2762 = vmatpush1.msra.mxu0 0.0
  %2763 = vmatprep.subr.mxu0 0.0
  %2764 = vmatpush1.msra.mxu0 0.0
  %2765 = vmatprep.subr.mxu0 0.0
  %2766 = vmatpush1.msra.mxu0 0.0
  %2767 = vmatprep.subr.mxu0 0.0
  %2768 = vmatpush1.msra.mxu0 0.0
  %2769 = vmatprep.subr.mxu0 0.0
  %2770 = vmatpush1.msra.mxu0 0.0
  %2771 = vmatprep.subr.mxu0 0.0
  %2772 = vmatpush1.msra.mxu0 0.0
  %2773 = vmatprep.subr.mxu0 0.0
  %2774 = vmatpush1.msra.mxu0 0.0
  %2775 = vmatprep.subr.mxu0 0.0
  %2776 = vmatpush1.msra.mxu0 0.0
  %2777 = vmatprep.subr.mxu0 0.0
  %2778 = vmatpush1.msra.mxu0 0.0
  %2779 = vmatprep.subr.mxu0 0.0
  %2780 = vmatpush1.msra.mxu0 0.0
  %2781 = vmatprep.subr.mxu0 0.0
  %2782 = vmatpush1.msra.mxu0 0.0
  %2783 = vmatprep.subr.mxu0 0.0
  %2784 = vmatpush1.msra.mxu0 0.0
  %2785 = vmatprep.subr.mxu0 0.0
  %2786 = vmatpush1.msra.mxu0 0.0
  %2787 = vmatprep.subr.mxu0 0.0
  %2788 = vmatpush1.msra.mxu0 0.0
  %2789 = vmatprep.subr.mxu0 0.0
  %2790 = vmatpush1.msra.mxu0 0.0
  %2791 = vmatprep.subr.mxu0 0.0
  %2792 = vmatpush1.msra.mxu0 0.0
  %2793 = vmatprep.subr.mxu0 0.0
  %2794 = vmatpush1.msra.mxu0 0.0
  %2795 = vmatprep.mubr.f32.mxu0 0.0
  %2796 = vmatmul.mubr.f32.gmra.mrb[0].mxu0 %v2729
  %v2797 = vpop.f32.mrb[0].mxu0
  %v2798 = vadd.f32 0.0, %v2797
  %v2799 = vpop.f32.mrb[0].mxu0
  %2800 = vdwg.mxu0
  %v2801 = vld [vmem:[%s8] sm:$0xff]
  %v2802 = vld [vmem:[%s8 + $0x8] sm:$0xff]
  %v2803 = vld [vmem:[%s8 + $0x10] sm:$0xff]
  %v2804 = vld [vmem:[%s8 + $0x18] sm:$0xff]
  %v2805 = vld [vmem:[%s8 + $0x20] sm:$0xff]
  %v2806 = vld [vmem:[%s8 + $0x28] sm:$0xff]
  %v2807 = vld [vmem:[%s8 + $0x30] sm:$0xff]
  %v2808 = vld [vmem:[%s8 + $0x38] sm:$0x3]
  %vm2809 = vcmask 474112
  %v2811 = vsel %vm2809, %v2798, 0
  %vm2813 = vcmask 1041408
  %v2815 = vsel %vm2813, %v2808, 0
  %2817 = vmatprep.subr.mxu0 0.0
  %2818 = vmatpush1.msra.mxu0 %v2801
  %2819 = vmatprep.subr.mxu0 0.0
  %2820 = vmatpush1.msra.mxu0 %v2802
  %2821 = vmatprep.subr.mxu0 0.0
  %2822 = vmatpush1.msra.mxu0 %v2803
  %2823 = vmatprep.subr.mxu0 0.0
  %2824 = vmatpush1.msra.mxu0 %v2804
  %2825 = vmatprep.subr.mxu0 0.0
  %2826 = vmatpush1.msra.mxu0 %v2805
  %2827 = vmatprep.subr.mxu0 0.0
  %2828 = vmatpush1.msra.mxu0 %v2806
  %2829 = vmatprep.subr.mxu0 0.0
  %2830 = vmatpush1.msra.mxu0 %v2807
  %2831 = vmatprep.subr.mxu0 0.0
  %2832 = vmatpush1.msra.mxu0 %v2815
  %2833 = vmatprep.subr.mxu0 0.0
  %2834 = vmatpush1.msra.mxu0 0.0
  %2835 = vmatprep.subr.mxu0 0.0
  %2836 = vmatpush1.msra.mxu0 0.0
  %2837 = vmatprep.subr.mxu0 0.0
  %2838 = vmatpush1.msra.mxu0 0.0
  %2839 = vmatprep.subr.mxu0 0.0
  %2840 = vmatpush1.msra.mxu0 0.0
  %2841 = vmatprep.subr.mxu0 0.0
  %2842 = vmatpush1.msra.mxu0 0.0
  %2843 = vmatprep.subr.mxu0 0.0
  %2844 = vmatpush1.msra.mxu0 0.0
  %2845 = vmatprep.subr.mxu0 0.0
  %2846 = vmatpush1.msra.mxu0 0.0
  %2847 = vmatprep.subr.mxu0 0.0
  %2848 = vmatpush1.msra.mxu0 0.0
  %2849 = vmatprep.subr.mxu0 0.0
  %2850 = vmatpush1.msra.mxu0 0.0
  %2851 = vmatprep.subr.mxu0 0.0
  %2852 = vmatpush1.msra.mxu0 0.0
  %2853 = vmatprep.subr.mxu0 0.0
  %2854 = vmatpush1.msra.mxu0 0.0
  %2855 = vmatprep.subr.mxu0 0.0
  %2856 = vmatpush1.msra.mxu0 0.0
  %2857 = vmatprep.subr.mxu0 0.0
  %2858 = vmatpush1.msra.mxu0 0.0
  %2859 = vmatprep.subr.mxu0 0.0
  %2860 = vmatpush1.msra.mxu0 0.0
  %2861 = vmatprep.subr.mxu0 0.0
  %2862 = vmatpush1.msra.mxu0 0.0
  %2863 = vmatprep.subr.mxu0 0.0
  %2864 = vmatpush1.msra.mxu0 0.0
  %2865 = vmatprep.subr.mxu0 0.0
  %2866 = vmatpush1.msra.mxu0 0.0
  %2867 = vmatprep.subr.mxu0 0.0
  %2868 = vmatpush1.msra.mxu0 0.0
  %2869 = vmatprep.subr.mxu0 0.0
  %2870 = vmatpush1.msra.mxu0 0.0
  %2871 = vmatprep.subr.mxu0 0.0
  %2872 = vmatpush1.msra.mxu0 0.0
  %2873 = vmatprep.subr.mxu0 0.0
  %2874 = vmatpush1.msra.mxu0 0.0
  %2875 = vmatprep.subr.mxu0 0.0
  %2876 = vmatpush1.msra.mxu0 0.0
  %2877 = vmatprep.subr.mxu0 0.0
  %2878 = vmatpush1.msra.mxu0 0.0
  %2879 = vmatprep.subr.mxu0 0.0
  %2880 = vmatpush1.msra.mxu0 0.0
  %2881 = vmatprep.mubr.f32.mxu0 0.0
  %2882 = vmatmul.mubr.f32.gmra.mrb[0].mxu0 %v2811
  %v2883 = vpop.f32.mrb[0].mxu0
  %v2884 = vadd.f32 0.0, %v2883
  %v2885 = vpop.f32.mrb[0].mxu0
  %2886 = vdwg.mxu0
  %vm2887 = vcmask 50176
  %v2888 = vsel %vm2887, %v2884, -inf
  %2889 = vmax.xlane.f32.xlu0 %v2888
  %v2890 = vpop.xlane.xlu0 %2889
  %v2891 = vld [vmem:[#allocation2] sm:$0x1]
  %v2893 = vlaneseq
  %v2894 = vshrl.u32 %v2893, 7
  %v2895 = vsub.s32 0, %v2894
  %v2896 = vrot.slane %v2891, %v2895
  %v2898 = vadd.f32 %v2890, %v2896
  %vm2899 = vcmask 1024
  %2900 = vst.msk [vmem:[%s10] sm:$0x3] %vm2899, %v2898
  // Predicated region
  $region42: #{fcn_forward_pallas.1} parent=0 // pred_check
    _
  $region43: #{fcn_forward_pallas.1} parent=0 // pred_check_branch
    %2902 = sbr.rel (0) target = $region45
  $region44: #{fcn_forward_pallas.1} parent=0 // pred_region
    _
  $region45: #{fcn_forward_pallas.1} parent=0 // pred_fallthru
    _
  // Predicated region
  $region46: #{fcn_forward_pallas.1} parent=0 // pred_check
    _
  $region47: #{fcn_forward_pallas.1} parent=0 // pred_check_branch
    %2904 = sbr.rel (0) target = $region49
  $region48: #{fcn_forward_pallas.1} parent=0 // pred_region
    _
  $region49: #{fcn_forward_pallas.1} parent=0 // pred_fallthru
    _

</llo_original>
